<compile_context>
chip_gen: v5e
topology: v5e:2x2
jax: 0.10.0
libtpu: 0.0.40
codegen_flags: <defaults>
</compile_context>

<pallas_src>
import math
import functools

import jax
import jax.numpy as jnp
from jax.experimental import pallas as pl
from jax.experimental.pallas import tpu as pltpu

EPS = 1e-5          # nn.LayerNorm default eps
NEG_INF = -1e30     # masked-score value (every row keeps its diagonal unmasked)


def _round_up(x, m):
    return (x + m - 1) // m * m


def _layernorm(x, gamma, beta):
    mean = jnp.mean(x, axis=-1, keepdims=True)
    var = jnp.mean((x - mean) ** 2, axis=-1, keepdims=True)
    return (x - mean) * jax.lax.rsqrt(var + EPS) * gamma + beta


# -----------------------------------------------------------------------------
# Fused decoder kernel.  grid = (layer, batch); both axes "arbitrary".
# The (B, S, D) activation lives in VMEM scratch across all layers; per-layer
# weights are DMA'd once per layer (index map depends only on the layer axis).
# -----------------------------------------------------------------------------
def fused_decoder_kernel(
    # prologue (grid-constant)
    z_ref, fcw_ref, fcb_ref, cosf_ref, sinf_ref,
    # per-layer stacked weights (indexed by grid axis 0)
    wqkv_ref, bqkv_ref, wo_ref, bo_ref,
    g1_ref, be1_ref, wf1_ref, bf1_ref, wf2_ref, bf2_ref, g2_ref, be2_ref,
    # output heads (grid-constant)
    gn_ref, bn_ref, wec_ref, bec_ref, wo1_ref, bo1_ref, wo2_ref, bo2_ref,
    # output
    out_ref,
    # scratch
    x_vmem,
    *, num_heads, approx_recip,
):
    l = pl.program_id(0)          # layer (outer; activations carried in VMEM)
    b = pl.program_id(1)          # batch element (inner; weights reused across it)
    cdt = wqkv_ref.dtype          # matmul input dtype (bf16 default, f32 for validation)

    S, D = cosf_ref.shape
    H = num_heads
    Dh = D // H
    half = D // 2
    scale = 1.0 / math.sqrt(Dh)

    # ------------- prologue (layer 0): fc_latent + seq broadcast + RoPE -------------
    @pl.when(l == 0)
    def _():
        zb = z_ref[0].astype(cdt)                                       # (1, latent)
        x0 = jnp.dot(zb, fcw_ref[...],
                     preferred_element_type=jnp.float32) + fcb_ref[...]  # (1, D)
        # rope(x)[s] = x * [cos_s, cos_s] + swap_half(x) * [-sin_s, sin_s]
        x0r = jnp.concatenate([x0[:, half:], x0[:, :half]], axis=-1)
        x_vmem[b] = x0 * cosf_ref[...] + x0r * sinf_ref[...]             # (S, D)

    x = x_vmem[b]                                                        # (S, D) f32

    # --------------------- causal multi-head self-attention -------------------------
    # Dense QKV projection: one lane-dense (S,D)@(D,3D) matmul -> full MXU width.
    qkv = jnp.dot(x.astype(cdt), wqkv_ref[0],
                  preferred_element_type=jnp.float32) + bqkv_ref[0]      # (S, 3D)

    # Causal mask from iotas (no (S,S) HBM input / VMEM buffers).
    row = jax.lax.broadcasted_iota(jnp.int32, (S, S), 0)
    col = jax.lax.broadcasted_iota(jnp.int32, (S, S), 1)
    causal = col <= row

    # Attention core per head: the contraction is Dh / S per head regardless of
    # batching, so a static python loop costs no extra MXU work; head outputs
    # are re-packed with one lane concat (XLU, off the MXU critical path).
    # TODO(synk): flash-style KV tiling (online softmax) once (S,S) scores stop
    #             fitting VMEM (esp. v7x 64 MiB).
    head_outs = []
    for h in range(H):
        qh = qkv[:, h * Dh:(h + 1) * Dh] * scale
        kh = qkv[:, D + h * Dh:D + (h + 1) * Dh]
        vh = qkv[:, 2 * D + h * Dh:2 * D + (h + 1) * Dh]
        s = jax.lax.dot_general(qh.astype(cdt), kh.astype(cdt),
                                (((1,), (1,)), ((), ())),
                                preferred_element_type=jnp.float32)      # (S, S)
        s = jnp.where(causal, s, NEG_INF)
        s = s - jnp.max(s, axis=-1, keepdims=True)
        p = jnp.exp(s)
        denom = jnp.sum(p, axis=-1, keepdims=True)
        if approx_recip:
            p = p * pl.reciprocal(denom, approx=True)   # EUP slot, ~free
        else:
            p = p / denom                               # exact validation path
        head_outs.append(jnp.dot(p.astype(cdt), vh.astype(cdt),
                                 preferred_element_type=jnp.float32))    # (S, Dh)
    o = jnp.concatenate(head_outs, axis=-1)                              # (S, D)

    # Dense out-projection: one (S,D)@(D,D) matmul (full contraction depth).
    attn = jnp.dot(o.astype(cdt), wo_ref[0],
                   preferred_element_type=jnp.float32) + bo_ref[0]

    # ---------------- residual + norm1 + FFN + residual + norm2 ---------------------
    # (dropout is identity in eval mode)
    x1 = _layernorm(x + attn, g1_ref[0], be1_ref[0])
    # TODO(synk): tile d_ff for very large d_model so h1/wf1/wf2 fit v7x 64 MiB VMEM.
    h1 = jnp.maximum(
        jnp.dot(x1.astype(cdt), wf1_ref[0],
                preferred_element_type=jnp.float32) + bf1_ref[0], 0.0).astype(cdt)
    ff = jnp.dot(h1, wf2_ref[0],
                 preferred_element_type=jnp.float32) + bf2_ref[0]
    x2 = _layernorm(x1 + ff, g2_ref[0], be2_ref[0])
    x_vmem[b] = x2

    # --------------- epilogue (last layer): decoder_norm + fused heads --------------
    @pl.when(l == pl.num_programs(0) - 1)
    def _():
        xn = _layernorm(x2, gn_ref[...], bn_ref[...]).astype(cdt)
        ec = jnp.dot(xn, wec_ref[...],
                     preferred_element_type=jnp.float32) + bec_ref[...]
        hh = jnp.maximum(
            jnp.dot(xn, wo1_ref[...],
                    preferred_element_type=jnp.float32) + bo1_ref[...], 0.0)
        oth = jnp.dot(hh.astype(cdt), wo2_ref[...],
                      preferred_element_type=jnp.float32) + bo2_ref[...]
        # elem/cmd logits and tanh'd "other" params live in disjoint lane ranges
        # of the 128-padded slab; padded lanes are exactly zero.
        out_ref[0] = ec + jnp.tanh(oth)


# -----------------------------------------------------------------------------
# Wrapper: weight restructuring + single pallas_call + output un-padding.
# -----------------------------------------------------------------------------
def vpvae_decoder_forward(z, target_len, params, num_heads, max_seq_len, *,
                          matmul_dtype=jnp.bfloat16, approx_softmax_recip=True,
                          vmem_limit_bytes=None):
    f32 = jnp.float32
    B, latent_dim = z.shape
    D = params["fc_w"].shape[1]
    layers = params["layers"]
    L = len(layers)
    H = num_heads
    assert D % H == 0 and D % 2 == 0
    half = D // 2
    # NOTE: like the PyTorch module, the returned sequence length is
    #       min(target_len, max_seq_len).
    S = min(target_len, max_seq_len)
    E = params["we"].shape[1]
    C = params["wc"].shape[1]
    P = params["wo2"].shape[1]
    Dmid = params["wo1"].shape[1]
    dff = layers[0]["wf1"].shape[1]
    OUT = _round_up(E + C + P, 128)     # lane-dense fused head output slab
    MID = _round_up(Dmid, 128)          # lane-dense head intermediate
    cdt = matmul_dtype
    wbytes = jnp.dtype(cdt).itemsize

    # --- RoPE tables (cos duplicated across halves; sin carries the half-swap sign,
    #     so the kernel only needs a static slice+concat of the (1,D) fc output) ----
    freq = jnp.arange(half, dtype=f32)
    inv_freq = 1.0 / (10000.0 ** (freq / half))
    ang = jnp.arange(S, dtype=f32)[:, None] * inv_freq[None, :]
    cos_full = jnp.concatenate([jnp.cos(ang), jnp.cos(ang)], axis=-1)    # (S, D)
    sin_sign = jnp.concatenate([-jnp.sin(ang), jnp.sin(ang)], axis=-1)   # (S, D)
    # TODO(synk): odd-d_model RoPE path (zero-pad + truncate) omitted; d_model even here.

    # --- stack per-layer weights on a leading L axis (kept dense, no per-head split)
    def stack(name):
        return jnp.stack([lp[name] for lp in layers])

    wqkv = stack("wqkv")                            # (L, D, 3D)
    bqkv = stack("bqkv")                            # (L, 1, 3D)
    wo = stack("wo")                                # (L, D, D)
    bo = stack("bo")                                # (L, 1, D)
    g1, be1 = stack("g1"), stack("be1")
    wf1, bf1 = stack("wf1"), stack("bf1")
    wf2, bf2 = stack("wf2"), stack("bf2")
    g2, be2 = stack("g2"), stack("be2")

    # --- output heads fused into one lane-padded slab (elem | cmd | other) ----------
    w_ec = (jnp.zeros((D, OUT), f32)
            .at[:, :E].set(params["we"])
            .at[:, E:E + C].set(params["wc"]))
    b_ec = (jnp.zeros((1, OUT), f32)
            .at[:, :E].set(params["be"])
            .at[:, E:E + C].set(params["bc"]))
    wo1p = jnp.zeros((D, MID), f32).at[:, :Dmid].set(params["wo1"])
    bo1p = jnp.zeros((1, MID), f32).at[:, :Dmid].set(params["bo1"])
    wo2p = jnp.zeros((MID, OUT), f32).at[:Dmid, E + C:E + C + P].set(params["wo2"])
    bo2p = jnp.zeros((1, OUT), f32).at[:, E + C:E + C + P].set(params["bo2"])
    gn, bn = params["gn"], params["bn"]

    # --- bf16 weights by default (f32 accumulation on the MXU) ----------------------
    def c(a):
        return a.astype(cdt)
    fc_w = c(params["fc_w"])
    fc_b = params["fc_b"]
    wqkv, wo, wf1, wf2 = c(wqkv), c(wo), c(wf1), c(wf2)
    w_ec, wo1p, wo2p = c(w_ec), c(wo1p), c(wo2p)

    z3 = z[:, None, :]                              # (B, 1, latent)

    # --- BlockSpecs.  Grid-constant / per-layer blocks are only DMA'd when their
    #     block index changes, so per-layer weights stream once per layer. ----------
    def const(a):
        zeros = (0,) * a.ndim
        return pl.BlockSpec(a.shape, lambda l, b: zeros)

    def per_layer(a):
        trail = (0,) * (a.ndim - 1)
        return pl.BlockSpec((1,) + a.shape[1:], lambda l, b: (l,) + trail)

    in_specs = [
        pl.BlockSpec((1, 1, latent_dim), lambda l, b: (b, 0, 0)),        # z
        const(fc_w), const(fc_b), const(cos_full), const(sin_sign),
        per_layer(wqkv), per_layer(bqkv), per_layer(wo), per_layer(bo),
        per_layer(g1), per_layer(be1), per_layer(wf1), per_layer(bf1),
        per_layer(wf2), per_layer(bf2), per_layer(g2), per_layer(be2),
        const(gn), const(bn), const(w_ec), const(b_ec),
        const(wo1p), const(bo1p), const(wo2p), const(bo2p),
    ]

    # --- VMEM plan estimate -> always pass vmem_limit_bytes (the default scoped
    #     limit is only 16/32 MiB; clamp to 64 MiB so it is safe on v7x as well;
    #     callers with very large configs can pass a larger value explicitly). ------
    if vmem_limit_bytes is None:
        per_layer_w = 12 * D * D * wbytes + (6 * D + dff + 4 * D) * 4
        const_w = ((latent_dim * D + D * OUT + D * MID + MID * OUT) * wbytes
                   + (2 * S * D + 2 * OUT + MID + 5 * D + latent_dim) * 4)
        out_blk = S * OUT * 4
        scratch = B * S * D * 4
        interm = (S * 3 * D + S * dff + 3 * S * S + 6 * S * D + 2 * S * OUT) * 4
        est = 2 * per_layer_w + 2 * const_w + 2 * out_blk + scratch + interm + (2 << 20)
        vmem_limit_bytes = int(min(max(est, 32 * 1024 * 1024), 64 * 1024 * 1024))

    # --- advisory cost estimate for XLA's scheduler ----------------------------------
    flops = int(2 * B * L * (S * D * 3 * D + 2 * S * S * D + S * D * D + 2 * S * D * dff)
                + 2 * B * (S * D * OUT + S * D * MID + S * MID * OUT)
                + 2 * B * latent_dim * D)
    transcendentals = int(B * L * H * S * S + B * S * OUT)
    bytes_accessed = int((L * 12 * D * D + latent_dim * D + D * OUT + D * MID
                          + MID * OUT) * wbytes
                         + (B * latent_dim + 2 * S * D + B * S * OUT * L) * 4)

    out = pl.pallas_call(
        functools.partial(fused_decoder_kernel, num_heads=H,
                          approx_recip=approx_softmax_recip),
        out_shape=jax.ShapeDtypeStruct((B, S, OUT), f32),
        grid=(L, B),
        in_specs=in_specs,
        out_specs=pl.BlockSpec((1, S, OUT), lambda l, b: (b, 0, 0)),
        scratch_shapes=[pltpu.VMEM((B, S, D), f32)],   # activations resident across layers
        compiler_params=pltpu.CompilerParams(
            dimension_semantics=("arbitrary", "arbitrary"),
            vmem_limit_bytes=vmem_limit_bytes),
        cost_estimate=pl.CostEstimate(flops=flops,
                                      transcendentals=transcendentals,
                                      bytes_accessed=bytes_accessed),
    )(
        z3, fc_w, fc_b, cos_full, sin_sign,
        wqkv, bqkv, wo, bo, g1, be1, wf1, bf1, wf2, bf2, g2, be2,
        gn, bn, w_ec, b_ec, wo1p, bo1p, wo2p, bo2p,
    )

    elem = out[:, :, :E]
    cmd = out[:, :, E:E + C]
    other = out[:, :, E + C:E + C + P]
    return elem, cmd, other


# -----------------------------------------------------------------------------
# Pure-JAX reference (same math, no Pallas) for correctness checking
# -----------------------------------------------------------------------------
def apply_rope_jax(x):
    bsz, seqlen, dim = x.shape
    half = dim // 2
    freq_seq = jnp.arange(half, dtype=jnp.float32)
    inv_freq = 1.0 / (10000.0 ** (freq_seq / half))
    pos = jnp.arange(seqlen, dtype=jnp.float32)
    sinusoid = pos[:, None] * inv_freq[None, :]
    sin = jnp.sin(sinusoid)[None, :, :]
    cos = jnp.cos(sinusoid)[None, :, :]
    x1, x2 = x[..., :half], x[..., half:]
    return jnp.concatenate([x1 * cos - x2 * sin, x1 * sin + x2 * cos], axis=-1)


def _layernorm_ref(x, gamma, beta):
    mean = jnp.mean(x, axis=-1, keepdims=True)
    var = jnp.mean((x - mean) ** 2, axis=-1, keepdims=True)
    return (x - mean) * jax.lax.rsqrt(var + EPS) * gamma + beta


def reference_forward(z, target_len, params, num_heads, max_seq_len):
    B = z.shape[0]
    D = params["fc_w"].shape[1]
    x0 = z @ params["fc_w"] + params["fc_b"][0]
    eff = min(target_len, max_seq_len)
    x = jnp.broadcast_to(x0[:, None, :], (B, eff, D))
    x = apply_rope_jax(x)
    S = eff
    Dh = D // num_heads
    row = jnp.arange(S)[:, None]
    col = jnp.arange(S)[None, :]
    allowed = col <= row
    for lp in params["layers"]:
        qkv = x @ lp["wqkv"] + lp["bqkv"][0]
        q, k, v = qkv[..., :D], qkv[..., D:2 * D], qkv[..., 2 * D:]
        q = q.reshape(B, S, num_heads, Dh).transpose(0, 2, 1, 3) / math.sqrt(Dh)
        k = k.reshape(B, S, num_heads, Dh).transpose(0, 2, 1, 3)
        v = v.reshape(B, S, num_heads, Dh).transpose(0, 2, 1, 3)
        s = jnp.einsum("bhqd,bhkd->bhqk", q, k)
        s = jnp.where(allowed[None, None], s, -jnp.inf)
        p = jax.nn.softmax(s, axis=-1)
        a = jnp.einsum("bhqk,bhkd->bhqd", p, v)
        a = a.transpose(0, 2, 1, 3).reshape(B, S, D)
        a = a @ lp["wo"] + lp["bo"][0]
        x1 = _layernorm_ref(x + a, lp["g1"][0], lp["be1"][0])
        h = jax.nn.relu(x1 @ lp["wf1"] + lp["bf1"][0])
        ff = h @ lp["wf2"] + lp["bf2"][0]
        x = _layernorm_ref(x1 + ff, lp["g2"][0], lp["be2"][0])
    xn = _layernorm_ref(x, params["gn"][0], params["bn"][0])
    elem = xn @ params["we"] + params["be"][0]
    cmd = xn @ params["wc"] + params["bc"][0]
    hh = jax.nn.relu(xn @ params["wo1"] + params["bo1"][0])
    other = jnp.tanh(hh @ params["wo2"] + params["bo2"][0])
    return elem, cmd, other


# -----------------------------------------------------------------------------
# Deterministic parameter construction (same layout as the PyTorch module)
# -----------------------------------------------------------------------------
def make_params(key, latent_dim, d_model, num_layers, num_element_types,
                num_command_types, num_other):
    keys = iter(jax.random.split(key, 64))

    def w(shape, scale=0.05):
        return jax.random.normal(next(keys), shape, jnp.float32) * scale

    def b(n):
        return jax.random.normal(next(keys), (1, n), jnp.float32) * 0.01

    d_ff = d_model * 4
    params = {
        "fc_w": w((latent_dim, d_model)),
        "fc_b": b(d_model),
        "layers": [],
        "gn": jnp.ones((1, d_model), jnp.float32),
        "bn": jnp.zeros((1, d_model), jnp.float32),
        "we": w((d_model, num_element_types)),
        "be": b(num_element_types),
        "wc": w((d_model, num_command_types)),
        "bc": b(num_command_types),
        "wo1": w((d_model, d_model // 2)),
        "bo1": b(d_model // 2),
        "wo2": w((d_model // 2, num_other)),
        "bo2": b(num_other),
    }
    for _ in range(num_layers):
        params["layers"].append({
            "wqkv": w((d_model, 3 * d_model)),
            "bqkv": b(3 * d_model),
            "wo": w((d_model, d_model)),
            "bo": b(d_model),
            "g1": jnp.ones((1, d_model), jnp.float32),
            "be1": jnp.zeros((1, d_model), jnp.float32),
            "wf1": w((d_model, d_ff)),
            "bf1": b(d_ff),
            "wf2": w((d_ff, d_model)),
            "bf2": b(d_model),
            "g2": jnp.ones((1, d_model), jnp.float32),
            "be2": jnp.zeros((1, d_model), jnp.float32),
        })
    return params


# -----------------------------------------------------------------------------
if __name__ == "__main__":
    B = 2
    latent_dim = 8
    d_model = 32
    num_layers = 2
    num_heads = 4
    max_seq_len = 16
    target_len = 8
    num_element_types = 6
    num_command_types = 5
    num_other = 4

    key = jax.random.PRNGKey(0)
    kz, kp = jax.random.split(key)
    z = jax.random.normal(kz, (B, latent_dim), jnp.float32)
    params = make_params(kp, latent_dim, d_model, num_layers,
                         num_element_types, num_command_types, num_other)

    # default performance config: bf16 MXU inputs + EUP approx softmax reciprocal
    elem, cmd, other = vpvae_decoder_forward(
        z, target_len, params, num_heads, max_seq_len)
    jax.block_until_ready((elem, cmd, other))

    # f32 / exact-divide validation config
    elem32, cmd32, other32 = vpvae_decoder_forward(
        z, target_len, params, num_heads, max_seq_len,
        matmul_dtype=jnp.float32, approx_softmax_recip=False)
    jax.block_until_ready((elem32, cmd32, other32))

    elem_r, cmd_r, other_r = reference_forward(
        z, target_len, params, num_heads, max_seq_len)

    assert elem.shape == (B, target_len, num_element_types)
    assert cmd.shape == (B, target_len, num_command_types)
    assert other.shape == (B, target_len, num_other)

    # exact-path check (f32 weights, exact softmax divide)
    assert jnp.allclose(elem32, elem_r, atol=5e-3, rtol=5e-3)
    assert jnp.allclose(cmd32, cmd_r, atol=5e-3, rtol=5e-3)
    assert jnp.allclose(other32, other_r, atol=5e-3, rtol=5e-3)
    # bf16 weights + approx reciprocal: looser tolerance
    assert jnp.allclose(elem, elem_r, atol=1e-1, rtol=1e-1)
    assert jnp.allclose(cmd, cmd_r, atol=1e-1, rtol=1e-1)
    assert jnp.allclose(other, other_r, atol=1e-1, rtol=1e-1)

    print("KERNEL_OK")
</pallas_src>

<mosaic_0001>
module attributes {stable_mosaic.version = 11 : i64} {
  func.func @fused_decoder_kernel(%arg0: i32, %arg1: i32, %arg2: memref<1x1x8xf32, #tpu.memory_space<vmem>>, %arg3: memref<8x32xbf16, #tpu.memory_space<vmem>>, %arg4: memref<1x32xf32, #tpu.memory_space<vmem>>, %arg5: memref<8x32xf32, #tpu.memory_space<vmem>>, %arg6: memref<8x32xf32, #tpu.memory_space<vmem>>, %arg7: memref<1x32x96xbf16, #tpu.memory_space<vmem>>, %arg8: memref<1x1x96xf32, #tpu.memory_space<vmem>>, %arg9: memref<1x32x32xbf16, #tpu.memory_space<vmem>>, %arg10: memref<1x1x32xf32, #tpu.memory_space<vmem>>, %arg11: memref<1x1x32xf32, #tpu.memory_space<vmem>>, %arg12: memref<1x1x32xf32, #tpu.memory_space<vmem>>, %arg13: memref<1x32x128xbf16, #tpu.memory_space<vmem>>, %arg14: memref<1x1x128xf32, #tpu.memory_space<vmem>>, %arg15: memref<1x128x32xbf16, #tpu.memory_space<vmem>>, %arg16: memref<1x1x32xf32, #tpu.memory_space<vmem>>, %arg17: memref<1x1x32xf32, #tpu.memory_space<vmem>>, %arg18: memref<1x1x32xf32, #tpu.memory_space<vmem>>, %arg19: memref<1x32xf32, #tpu.memory_space<vmem>>, %arg20: memref<1x32xf32, #tpu.memory_space<vmem>>, %arg21: memref<32x128xbf16, #tpu.memory_space<vmem>>, %arg22: memref<1x128xf32, #tpu.memory_space<vmem>>, %arg23: memref<32x128xbf16, #tpu.memory_space<vmem>>, %arg24: memref<1x128xf32, #tpu.memory_space<vmem>>, %arg25: memref<128x128xbf16, #tpu.memory_space<vmem>>, %arg26: memref<1x128xf32, #tpu.memory_space<vmem>>, %arg27: memref<1x8x128xf32, #tpu.memory_space<vmem>>, %arg28: memref<2x8x32xf32, #tpu.memory_space<vmem>>) attributes {dimension_semantics = [#tpu.dimension_semantics<arbitrary>, #tpu.dimension_semantics<arbitrary>], iteration_bounds = array<i64: 2, 2>, scalar_prefetch = 0 : i64, scratch_operands = 1 : i64, tpu.core_type = #tpu.core_type<tc>, window_params = [{transform_indices = @transform_0, window_bounds = array<i64: 1, 1, 8>}, {pipeline_mode = #tpu.pipeline_mode<synchronous>, transform_indices = @transform_1, window_bounds = array<i64: 8, 32>}, {pipeline_mode = #tpu.pipeline_mode<synchronous>, transform_indices = @transform_2, window_bounds = array<i64: 1, 32>}, {pipeline_mode = #tpu.pipeline_mode<synchronous>, transform_indices = @transform_3, window_bounds = array<i64: 8, 32>}, {pipeline_mode = #tpu.pipeline_mode<synchronous>, transform_indices = @transform_4, window_bounds = array<i64: 8, 32>}, {transform_indices = @transform_5, window_bounds = array<i64: 1, 32, 96>}, {transform_indices = @transform_6, window_bounds = array<i64: 1, 1, 96>}, {transform_indices = @transform_7, window_bounds = array<i64: 1, 32, 32>}, {transform_indices = @transform_8, window_bounds = array<i64: 1, 1, 32>}, {transform_indices = @transform_9, window_bounds = array<i64: 1, 1, 32>}, {transform_indices = @transform_10, window_bounds = array<i64: 1, 1, 32>}, {transform_indices = @transform_11, window_bounds = array<i64: 1, 32, 128>}, {transform_indices = @transform_12, window_bounds = array<i64: 1, 1, 128>}, {transform_indices = @transform_13, window_bounds = array<i64: 1, 128, 32>}, {transform_indices = @transform_14, window_bounds = array<i64: 1, 1, 32>}, {transform_indices = @transform_15, window_bounds = array<i64: 1, 1, 32>}, {transform_indices = @transform_16, window_bounds = array<i64: 1, 1, 32>}, {pipeline_mode = #tpu.pipeline_mode<synchronous>, transform_indices = @transform_17, window_bounds = array<i64: 1, 32>}, {pipeline_mode = #tpu.pipeline_mode<synchronous>, transform_indices = @transform_18, window_bounds = array<i64: 1, 32>}, {pipeline_mode = #tpu.pipeline_mode<synchronous>, transform_indices = @transform_19, window_bounds = array<i64: 32, 128>}, {pipeline_mode = #tpu.pipeline_mode<synchronous>, transform_indices = @transform_20, window_bounds = array<i64: 1, 128>}, {pipeline_mode = #tpu.pipeline_mode<synchronous>, transform_indices = @transform_21, window_bounds = array<i64: 32, 128>}, {pipeline_mode = #tpu.pipeline_mode<synchronous>, transform_indices = @transform_22, window_bounds = array<i64: 1, 128>}, {pipeline_mode = #tpu.pipeline_mode<synchronous>, transform_indices = @transform_23, window_bounds = array<i64: 128, 128>}, {pipeline_mode = #tpu.pipeline_mode<synchronous>, transform_indices = @transform_24, window_bounds = array<i64: 1, 128>}, {transform_indices = @transform_25, window_bounds = array<i64: 1, 8, 128>}]} {
    %c0_i32 = arith.constant 0 : i32
    %0 = arith.cmpi eq, %arg0, %c0_i32 : i32
    %1 = arith.extui %0 : i1 to i32
    %c0_i32_0 = arith.constant 0 : i32
    %2 = arith.cmpi ne, %1, %c0_i32_0 : i32
    scf.if %2 {
      %c0_79 = arith.constant 0 : index
      %c0_80 = arith.constant 0 : index
      %c0_81 = arith.constant 0 : index
      %197 = vector.load %arg2[%c0_79, %c0_80, %c0_81] : memref<1x1x8xf32, #tpu.memory_space<vmem>>, vector<1x1x8xf32>
      %198 = vector.shape_cast %197 : vector<1x1x8xf32> to vector<1x8xf32>
      %199 = arith.truncf %198 : vector<1x8xf32> to vector<1x8xbf16>
      %c0_82 = arith.constant 0 : index
      %c0_83 = arith.constant 0 : index
      %200 = vector.load %arg3[%c0_82, %c0_83] : memref<8x32xbf16, #tpu.memory_space<vmem>>, vector<8x32xbf16>
      %cst_84 = arith.constant dense<0.000000e+00> : vector<1x32xf32>
      %201 = tpu.matmul %199, %200, %cst_84 {dimension_numbers = #tpu.dot_dimension_numbers<[1], [0], [0], [1], [0, 0, 1, 1], [], []>} : vector<1x8xbf16>, vector<8x32xbf16>, vector<1x32xf32> -> vector<1x32xf32>
      %c0_85 = arith.constant 0 : index
      %c0_86 = arith.constant 0 : index
      %202 = vector.load %arg4[%c0_85, %c0_86] : memref<1x32xf32, #tpu.memory_space<vmem>>, vector<1x32xf32>
      %203 = arith.addf %201, %202 : vector<1x32xf32>
      %204 = vector.extract_strided_slice %203 {offsets = [0, 16], sizes = [1, 16], strides = [1, 1]} : vector<1x32xf32> to vector<1x16xf32>
      %205 = vector.extract_strided_slice %203 {offsets = [0, 0], sizes = [1, 16], strides = [1, 1]} : vector<1x32xf32> to vector<1x16xf32>
      %206 = tpu.concatenate %204, %205 in 1 : vector<1x16xf32>, vector<1x16xf32> -> vector<1x32xf32>
      %c0_87 = arith.constant 0 : index
      %c0_88 = arith.constant 0 : index
      %207 = vector.load %arg5[%c0_87, %c0_88] : memref<8x32xf32, #tpu.memory_space<vmem>>, vector<8x32xf32>
      %208 = vector.broadcast %203 : vector<1x32xf32> to vector<8x32xf32>
      %209 = arith.mulf %208, %207 : vector<8x32xf32>
      %c0_89 = arith.constant 0 : index
      %c0_90 = arith.constant 0 : index
      %210 = vector.load %arg6[%c0_89, %c0_90] : memref<8x32xf32, #tpu.memory_space<vmem>>, vector<8x32xf32>
      %211 = vector.broadcast %206 : vector<1x32xf32> to vector<8x32xf32>
      %212 = arith.mulf %211, %210 : vector<8x32xf32>
      %213 = arith.addf %209, %212 : vector<8x32xf32>
      %214 = arith.index_cast %arg1 : i32 to index
      %c0_91 = arith.constant 0 : index
      %c0_92 = arith.constant 0 : index
      %215 = vector.load %arg28[%214, %c0_91, %c0_92] : memref<2x8x32xf32, #tpu.memory_space<vmem>>, vector<1x8x32xf32>
      %216 = vector.shape_cast %215 : vector<1x8x32xf32> to vector<8x32xf32>
      %217 = vector.shape_cast %213 : vector<8x32xf32> to vector<1x8x32xf32>
      tpu.vector_store %arg28[%214, %c0_91, %c0_92], %217 {strides = array<i32>} : memref<2x8x32xf32, #tpu.memory_space<vmem>>, vector<1x8x32xf32>,
    } else {
    }
    %3 = arith.index_cast %arg1 : i32 to index
    %c0 = arith.constant 0 : index
    %c0_1 = arith.constant 0 : index
    %4 = vector.load %arg28[%3, %c0, %c0_1] : memref<2x8x32xf32, #tpu.memory_space<vmem>>, vector<1x8x32xf32>
    %5 = vector.shape_cast %4 : vector<1x8x32xf32> to vector<8x32xf32>
    %6 = arith.truncf %5 : vector<8x32xf32> to vector<8x32xbf16>
    %c0_2 = arith.constant 0 : index
    %c0_3 = arith.constant 0 : index
    %c0_4 = arith.constant 0 : index
    %7 = vector.load %arg7[%c0_2, %c0_3, %c0_4] : memref<1x32x96xbf16, #tpu.memory_space<vmem>>, vector<1x32x96xbf16>
    %8 = vector.shape_cast %7 : vector<1x32x96xbf16> to vector<32x96xbf16>
    %cst = arith.constant dense<0.000000e+00> : vector<8x96xf32>
    %9 = tpu.matmul %6, %8, %cst {dimension_numbers = #tpu.dot_dimension_numbers<[1], [0], [0], [1], [0, 0, 1, 1], [], []>} : vector<8x32xbf16>, vector<32x96xbf16>, vector<8x96xf32> -> vector<8x96xf32>
    %c0_5 = arith.constant 0 : index
    %c0_6 = arith.constant 0 : index
    %c0_7 = arith.constant 0 : index
    %10 = vector.load %arg8[%c0_5, %c0_6, %c0_7] : memref<1x1x96xf32, #tpu.memory_space<vmem>>, vector<1x1x96xf32>
    %11 = vector.shape_cast %10 : vector<1x1x96xf32> to vector<1x96xf32>
    %12 = vector.broadcast %11 : vector<1x96xf32> to vector<8x96xf32>
    %13 = arith.addf %9, %12 : vector<8x96xf32>
    %14 = tpu.iota {dimensions = array<i32: 0>} : vector<8x8xi32>
    %15 = tpu.iota {dimensions = array<i32: 1>} : vector<8x8xi32>
    %16 = arith.cmpi sle, %15, %14 : vector<8x8xi32>
    %17 = vector.extract_strided_slice %13 {offsets = [0, 0], sizes = [8, 8], strides = [1, 1]} : vector<8x96xf32> to vector<8x8xf32>
    %cst_8 = arith.constant 0.353553385 : f32
    %18 = vector.broadcast %cst_8 : f32 to vector<8x8xf32>
    %19 = arith.mulf %17, %18 : vector<8x8xf32>
    %20 = vector.extract_strided_slice %13 {offsets = [0, 32], sizes = [8, 8], strides = [1, 1]} : vector<8x96xf32> to vector<8x8xf32>
    %21 = vector.extract_strided_slice %13 {offsets = [0, 64], sizes = [8, 8], strides = [1, 1]} : vector<8x96xf32> to vector<8x8xf32>
    %22 = arith.truncf %19 : vector<8x8xf32> to vector<8x8xbf16>
    %23 = arith.truncf %20 : vector<8x8xf32> to vector<8x8xbf16>
    %cst_9 = arith.constant dense<0.000000e+00> : vector<8x8xf32>
    %24 = tpu.matmul %22, %23, %cst_9 {dimension_numbers = #tpu.dot_dimension_numbers<[1], [1], [0], [0], [0, 0, 1, 0], [], []>} : vector<8x8xbf16>, vector<8x8xbf16>, vector<8x8xf32> -> vector<8x8xf32>
    %cst_10 = arith.constant -1.000000e+30 : f32
    %25 = vector.broadcast %cst_10 : f32 to vector<8x8xf32>
    %26 = arith.select %16, %24, %25 : vector<8x8xi1>, vector<8x8xf32>
    %cst_11 = arith.constant dense<0xFF800000> : vector<8xf32>
    %27 = vector.multi_reduction <maximumf>, %26, %cst_11 [1] : vector<8x8xf32> to vector<8xf32>
    %28 = vector.shape_cast %27 : vector<8xf32> to vector<8x1xf32>
    %29 = vector.broadcast %28 : vector<8x1xf32> to vector<8x8xf32>
    %30 = arith.subf %26, %29 : vector<8x8xf32>
    %31 = math.exp %30 : vector<8x8xf32>
    %cst_12 = arith.constant dense<0.000000e+00> : vector<8xf32>
    %32 = vector.multi_reduction <add>, %31, %cst_12 [1] : vector<8x8xf32> to vector<8xf32>
    %33 = vector.shape_cast %32 : vector<8xf32> to vector<8x1xf32>
    %34 = tpu.reciprocal %33 {approx = true} : vector<8x1xf32> -> vector<8x1xf32>
    %35 = vector.broadcast %34 : vector<8x1xf32> to vector<8x8xf32>
    %36 = arith.mulf %31, %35 : vector<8x8xf32>
    %37 = arith.truncf %36 : vector<8x8xf32> to vector<8x8xbf16>
    %38 = arith.truncf %21 : vector<8x8xf32> to vector<8x8xbf16>
    %cst_13 = arith.constant dense<0.000000e+00> : vector<8x8xf32>
    %39 = tpu.matmul %37, %38, %cst_13 {dimension_numbers = #tpu.dot_dimension_numbers<[1], [0], [0], [1], [0, 0, 1, 1], [], []>} : vector<8x8xbf16>, vector<8x8xbf16>, vector<8x8xf32> -> vector<8x8xf32>
    %40 = vector.extract_strided_slice %13 {offsets = [0, 8], sizes = [8, 8], strides = [1, 1]} : vector<8x96xf32> to vector<8x8xf32>
    %cst_14 = arith.constant 0.353553385 : f32
    %41 = vector.broadcast %cst_14 : f32 to vector<8x8xf32>
    %42 = arith.mulf %40, %41 : vector<8x8xf32>
    %43 = vector.extract_strided_slice %13 {offsets = [0, 40], sizes = [8, 8], strides = [1, 1]} : vector<8x96xf32> to vector<8x8xf32>
    %44 = vector.extract_strided_slice %13 {offsets = [0, 72], sizes = [8, 8], strides = [1, 1]} : vector<8x96xf32> to vector<8x8xf32>
    %45 = arith.truncf %42 : vector<8x8xf32> to vector<8x8xbf16>
    %46 = arith.truncf %43 : vector<8x8xf32> to vector<8x8xbf16>
    %cst_15 = arith.constant dense<0.000000e+00> : vector<8x8xf32>
    %47 = tpu.matmul %45, %46, %cst_15 {dimension_numbers = #tpu.dot_dimension_numbers<[1], [1], [0], [0], [0, 0, 1, 0], [], []>} : vector<8x8xbf16>, vector<8x8xbf16>, vector<8x8xf32> -> vector<8x8xf32>
    %cst_16 = arith.constant -1.000000e+30 : f32
    %48 = vector.broadcast %cst_16 : f32 to vector<8x8xf32>
    %49 = arith.select %16, %47, %48 : vector<8x8xi1>, vector<8x8xf32>
    %cst_17 = arith.constant dense<0xFF800000> : vector<8xf32>
    %50 = vector.multi_reduction <maximumf>, %49, %cst_17 [1] : vector<8x8xf32> to vector<8xf32>
    %51 = vector.shape_cast %50 : vector<8xf32> to vector<8x1xf32>
    %52 = vector.broadcast %51 : vector<8x1xf32> to vector<8x8xf32>
    %53 = arith.subf %49, %52 : vector<8x8xf32>
    %54 = math.exp %53 : vector<8x8xf32>
    %cst_18 = arith.constant dense<0.000000e+00> : vector<8xf32>
    %55 = vector.multi_reduction <add>, %54, %cst_18 [1] : vector<8x8xf32> to vector<8xf32>
    %56 = vector.shape_cast %55 : vector<8xf32> to vector<8x1xf32>
    %57 = tpu.reciprocal %56 {approx = true} : vector<8x1xf32> -> vector<8x1xf32>
    %58 = vector.broadcast %57 : vector<8x1xf32> to vector<8x8xf32>
    %59 = arith.mulf %54, %58 : vector<8x8xf32>
    %60 = arith.truncf %59 : vector<8x8xf32> to vector<8x8xbf16>
    %61 = arith.truncf %44 : vector<8x8xf32> to vector<8x8xbf16>
    %cst_19 = arith.constant dense<0.000000e+00> : vector<8x8xf32>
    %62 = tpu.matmul %60, %61, %cst_19 {dimension_numbers = #tpu.dot_dimension_numbers<[1], [0], [0], [1], [0, 0, 1, 1], [], []>} : vector<8x8xbf16>, vector<8x8xbf16>, vector<8x8xf32> -> vector<8x8xf32>
    %63 = vector.extract_strided_slice %13 {offsets = [0, 16], sizes = [8, 8], strides = [1, 1]} : vector<8x96xf32> to vector<8x8xf32>
    %cst_20 = arith.constant 0.353553385 : f32
    %64 = vector.broadcast %cst_20 : f32 to vector<8x8xf32>
    %65 = arith.mulf %63, %64 : vector<8x8xf32>
    %66 = vector.extract_strided_slice %13 {offsets = [0, 48], sizes = [8, 8], strides = [1, 1]} : vector<8x96xf32> to vector<8x8xf32>
    %67 = vector.extract_strided_slice %13 {offsets = [0, 80], sizes = [8, 8], strides = [1, 1]} : vector<8x96xf32> to vector<8x8xf32>
    %68 = arith.truncf %65 : vector<8x8xf32> to vector<8x8xbf16>
    %69 = arith.truncf %66 : vector<8x8xf32> to vector<8x8xbf16>
    %cst_21 = arith.constant dense<0.000000e+00> : vector<8x8xf32>
    %70 = tpu.matmul %68, %69, %cst_21 {dimension_numbers = #tpu.dot_dimension_numbers<[1], [1], [0], [0], [0, 0, 1, 0], [], []>} : vector<8x8xbf16>, vector<8x8xbf16>, vector<8x8xf32> -> vector<8x8xf32>
    %cst_22 = arith.constant -1.000000e+30 : f32
    %71 = vector.broadcast %cst_22 : f32 to vector<8x8xf32>
    %72 = arith.select %16, %70, %71 : vector<8x8xi1>, vector<8x8xf32>
    %cst_23 = arith.constant dense<0xFF800000> : vector<8xf32>
    %73 = vector.multi_reduction <maximumf>, %72, %cst_23 [1] : vector<8x8xf32> to vector<8xf32>
    %74 = vector.shape_cast %73 : vector<8xf32> to vector<8x1xf32>
    %75 = vector.broadcast %74 : vector<8x1xf32> to vector<8x8xf32>
    %76 = arith.subf %72, %75 : vector<8x8xf32>
    %77 = math.exp %76 : vector<8x8xf32>
    %cst_24 = arith.constant dense<0.000000e+00> : vector<8xf32>
    %78 = vector.multi_reduction <add>, %77, %cst_24 [1] : vector<8x8xf32> to vector<8xf32>
    %79 = vector.shape_cast %78 : vector<8xf32> to vector<8x1xf32>
    %80 = tpu.reciprocal %79 {approx = true} : vector<8x1xf32> -> vector<8x1xf32>
    %81 = vector.broadcast %80 : vector<8x1xf32> to vector<8x8xf32>
    %82 = arith.mulf %77, %81 : vector<8x8xf32>
    %83 = arith.truncf %82 : vector<8x8xf32> to vector<8x8xbf16>
    %84 = arith.truncf %67 : vector<8x8xf32> to vector<8x8xbf16>
    %cst_25 = arith.constant dense<0.000000e+00> : vector<8x8xf32>
    %85 = tpu.matmul %83, %84, %cst_25 {dimension_numbers = #tpu.dot_dimension_numbers<[1], [0], [0], [1], [0, 0, 1, 1], [], []>} : vector<8x8xbf16>, vector<8x8xbf16>, vector<8x8xf32> -> vector<8x8xf32>
    %86 = vector.extract_strided_slice %13 {offsets = [0, 24], sizes = [8, 8], strides = [1, 1]} : vector<8x96xf32> to vector<8x8xf32>
    %cst_26 = arith.constant 0.353553385 : f32
    %87 = vector.broadcast %cst_26 : f32 to vector<8x8xf32>
    %88 = arith.mulf %86, %87 : vector<8x8xf32>
    %89 = vector.extract_strided_slice %13 {offsets = [0, 56], sizes = [8, 8], strides = [1, 1]} : vector<8x96xf32> to vector<8x8xf32>
    %90 = vector.extract_strided_slice %13 {offsets = [0, 88], sizes = [8, 8], strides = [1, 1]} : vector<8x96xf32> to vector<8x8xf32>
    %91 = arith.truncf %88 : vector<8x8xf32> to vector<8x8xbf16>
    %92 = arith.truncf %89 : vector<8x8xf32> to vector<8x8xbf16>
    %cst_27 = arith.constant dense<0.000000e+00> : vector<8x8xf32>
    %93 = tpu.matmul %91, %92, %cst_27 {dimension_numbers = #tpu.dot_dimension_numbers<[1], [1], [0], [0], [0, 0, 1, 0], [], []>} : vector<8x8xbf16>, vector<8x8xbf16>, vector<8x8xf32> -> vector<8x8xf32>
    %cst_28 = arith.constant -1.000000e+30 : f32
    %94 = vector.broadcast %cst_28 : f32 to vector<8x8xf32>
    %95 = arith.select %16, %93, %94 : vector<8x8xi1>, vector<8x8xf32>
    %cst_29 = arith.constant dense<0xFF800000> : vector<8xf32>
    %96 = vector.multi_reduction <maximumf>, %95, %cst_29 [1] : vector<8x8xf32> to vector<8xf32>
    %97 = vector.shape_cast %96 : vector<8xf32> to vector<8x1xf32>
    %98 = vector.broadcast %97 : vector<8x1xf32> to vector<8x8xf32>
    %99 = arith.subf %95, %98 : vector<8x8xf32>
    %100 = math.exp %99 : vector<8x8xf32>
    %cst_30 = arith.constant dense<0.000000e+00> : vector<8xf32>
    %101 = vector.multi_reduction <add>, %100, %cst_30 [1] : vector<8x8xf32> to vector<8xf32>
    %102 = vector.shape_cast %101 : vector<8xf32> to vector<8x1xf32>
    %103 = tpu.reciprocal %102 {approx = true} : vector<8x1xf32> -> vector<8x1xf32>
    %104 = vector.broadcast %103 : vector<8x1xf32> to vector<8x8xf32>
    %105 = arith.mulf %100, %104 : vector<8x8xf32>
    %106 = arith.truncf %105 : vector<8x8xf32> to vector<8x8xbf16>
    %107 = arith.truncf %90 : vector<8x8xf32> to vector<8x8xbf16>
    %cst_31 = arith.constant dense<0.000000e+00> : vector<8x8xf32>
    %108 = tpu.matmul %106, %107, %cst_31 {dimension_numbers = #tpu.dot_dimension_numbers<[1], [0], [0], [1], [0, 0, 1, 1], [], []>} : vector<8x8xbf16>, vector<8x8xbf16>, vector<8x8xf32> -> vector<8x8xf32>
    %109 = tpu.concatenate %39, %62, %85, %108 in 1 : vector<8x8xf32>, vector<8x8xf32>, vector<8x8xf32>, vector<8x8xf32> -> vector<8x32xf32>
    %110 = arith.truncf %109 : vector<8x32xf32> to vector<8x32xbf16>
    %c0_32 = arith.constant 0 : index
    %c0_33 = arith.constant 0 : index
    %c0_34 = arith.constant 0 : index
    %111 = vector.load %arg9[%c0_32, %c0_33, %c0_34] : memref<1x32x32xbf16, #tpu.memory_space<vmem>>, vector<1x32x32xbf16>
    %112 = vector.shape_cast %111 : vector<1x32x32xbf16> to vector<32x32xbf16>
    %cst_35 = arith.constant dense<0.000000e+00> : vector<8x32xf32>
    %113 = tpu.matmul %110, %112, %cst_35 {dimension_numbers = #tpu.dot_dimension_numbers<[1], [0], [0], [1], [0, 0, 1, 1], [], []>} : vector<8x32xbf16>, vector<32x32xbf16>, vector<8x32xf32> -> vector<8x32xf32>
    %c0_36 = arith.constant 0 : index
    %c0_37 = arith.constant 0 : index
    %c0_38 = arith.constant 0 : index
    %114 = vector.load %arg10[%c0_36, %c0_37, %c0_38] : memref<1x1x32xf32, #tpu.memory_space<vmem>>, vector<1x1x32xf32>
    %115 = vector.shape_cast %114 : vector<1x1x32xf32> to vector<1x32xf32>
    %116 = vector.broadcast %115 : vector<1x32xf32> to vector<8x32xf32>
    %117 = arith.addf %113, %116 : vector<8x32xf32>
    %118 = arith.addf %5, %117 : vector<8x32xf32>
    %c0_39 = arith.constant 0 : index
    %c0_40 = arith.constant 0 : index
    %c0_41 = arith.constant 0 : index
    %119 = vector.load %arg11[%c0_39, %c0_40, %c0_41] : memref<1x1x32xf32, #tpu.memory_space<vmem>>, vector<1x1x32xf32>
    %120 = vector.shape_cast %119 : vector<1x1x32xf32> to vector<1x32xf32>
    %c0_42 = arith.constant 0 : index
    %c0_43 = arith.constant 0 : index
    %c0_44 = arith.constant 0 : index
    %121 = vector.load %arg12[%c0_42, %c0_43, %c0_44] : memref<1x1x32xf32, #tpu.memory_space<vmem>>, vector<1x1x32xf32>
    %122 = vector.shape_cast %121 : vector<1x1x32xf32> to vector<1x32xf32>
    %cst_45 = arith.constant dense<0.000000e+00> : vector<8xf32>
    %123 = vector.multi_reduction <add>, %118, %cst_45 [1] : vector<8x32xf32> to vector<8xf32>
    %124 = vector.shape_cast %123 : vector<8xf32> to vector<8x1xf32>
    %cst_46 = arith.constant 3.200000e+01 : f32
    %125 = vector.broadcast %cst_46 : f32 to vector<8x1xf32>
    %126 = arith.divf %124, %125 : vector<8x1xf32>
    %127 = vector.broadcast %126 : vector<8x1xf32> to vector<8x32xf32>
    %128 = arith.subf %118, %127 : vector<8x32xf32>
    %129 = arith.mulf %128, %128 : vector<8x32xf32>
    %cst_47 = arith.constant dense<0.000000e+00> : vector<8xf32>
    %130 = vector.multi_reduction <add>, %129, %cst_47 [1] : vector<8x32xf32> to vector<8xf32>
    %131 = vector.shape_cast %130 : vector<8xf32> to vector<8x1xf32>
    %cst_48 = arith.constant 3.200000e+01 : f32
    %132 = vector.broadcast %cst_48 : f32 to vector<8x1xf32>
    %133 = arith.divf %131, %132 : vector<8x1xf32>
    %134 = vector.broadcast %126 : vector<8x1xf32> to vector<8x32xf32>
    %135 = arith.subf %118, %134 : vector<8x32xf32>
    %cst_49 = arith.constant 9.99999974E-6 : f32
    %136 = vector.broadcast %cst_49 : f32 to vector<8x1xf32>
    %137 = arith.addf %133, %136 : vector<8x1xf32>
    %138 = math.rsqrt %137 : vector<8x1xf32>
    %139 = vector.broadcast %138 : vector<8x1xf32> to vector<8x32xf32>
    %140 = arith.mulf %135, %139 : vector<8x32xf32>
    %141 = vector.broadcast %120 : vector<1x32xf32> to vector<8x32xf32>
    %142 = arith.mulf %140, %141 : vector<8x32xf32>
    %143 = vector.broadcast %122 : vector<1x32xf32> to vector<8x32xf32>
    %144 = arith.addf %142, %143 : vector<8x32xf32>
    %145 = arith.truncf %144 : vector<8x32xf32> to vector<8x32xbf16>
    %c0_50 = arith.constant 0 : index
    %c0_51 = arith.constant 0 : index
    %c0_52 = arith.constant 0 : index
    %146 = vector.load %arg13[%c0_50, %c0_51, %c0_52] : memref<1x32x128xbf16, #tpu.memory_space<vmem>>, vector<1x32x128xbf16>
    %147 = vector.shape_cast %146 : vector<1x32x128xbf16> to vector<32x128xbf16>
    %cst_53 = arith.constant dense<0.000000e+00> : vector<8x128xf32>
    %148 = tpu.matmul %145, %147, %cst_53 {dimension_numbers = #tpu.dot_dimension_numbers<[1], [0], [0], [1], [0, 0, 1, 1], [], []>} : vector<8x32xbf16>, vector<32x128xbf16>, vector<8x128xf32> -> vector<8x128xf32>
    %c0_54 = arith.constant 0 : index
    %c0_55 = arith.constant 0 : index
    %c0_56 = arith.constant 0 : index
    %149 = vector.load %arg14[%c0_54, %c0_55, %c0_56] : memref<1x1x128xf32, #tpu.memory_space<vmem>>, vector<1x1x128xf32>
    %150 = vector.shape_cast %149 : vector<1x1x128xf32> to vector<1x128xf32>
    %151 = vector.broadcast %150 : vector<1x128xf32> to vector<8x128xf32>
    %152 = arith.addf %148, %151 : vector<8x128xf32>
    %cst_57 = arith.constant 0.000000e+00 : f32
    %153 = vector.broadcast %cst_57 : f32 to vector<8x128xf32>
    %154 = arith.maximumf %152, %153 : vector<8x128xf32>
    %155 = arith.truncf %154 : vector<8x128xf32> to vector<8x128xbf16>
    %c0_58 = arith.constant 0 : index
    %c0_59 = arith.constant 0 : index
    %c0_60 = arith.constant 0 : index
    %156 = vector.load %arg15[%c0_58, %c0_59, %c0_60] : memref<1x128x32xbf16, #tpu.memory_space<vmem>>, vector<1x128x32xbf16>
    %157 = vector.shape_cast %156 : vector<1x128x32xbf16> to vector<128x32xbf16>
    %cst_61 = arith.constant dense<0.000000e+00> : vector<8x32xf32>
    %158 = tpu.matmul %155, %157, %cst_61 {dimension_numbers = #tpu.dot_dimension_numbers<[1], [0], [0], [1], [0, 0, 1, 1], [], []>} : vector<8x128xbf16>, vector<128x32xbf16>, vector<8x32xf32> -> vector<8x32xf32>
    %c0_62 = arith.constant 0 : index
    %c0_63 = arith.constant 0 : index
    %c0_64 = arith.constant 0 : index
    %159 = vector.load %arg16[%c0_62, %c0_63, %c0_64] : memref<1x1x32xf32, #tpu.memory_space<vmem>>, vector<1x1x32xf32>
    %160 = vector.shape_cast %159 : vector<1x1x32xf32> to vector<1x32xf32>
    %161 = vector.broadcast %160 : vector<1x32xf32> to vector<8x32xf32>
    %162 = arith.addf %158, %161 : vector<8x32xf32>
    %163 = arith.addf %144, %162 : vector<8x32xf32>
    %c0_65 = arith.constant 0 : index
    %c0_66 = arith.constant 0 : index
    %c0_67 = arith.constant 0 : index
    %164 = vector.load %arg17[%c0_65, %c0_66, %c0_67] : memref<1x1x32xf32, #tpu.memory_space<vmem>>, vector<1x1x32xf32>
    %165 = vector.shape_cast %164 : vector<1x1x32xf32> to vector<1x32xf32>
    %c0_68 = arith.constant 0 : index
    %c0_69 = arith.constant 0 : index
    %c0_70 = arith.constant 0 : index
    %166 = vector.load %arg18[%c0_68, %c0_69, %c0_70] : memref<1x1x32xf32, #tpu.memory_space<vmem>>, vector<1x1x32xf32>
    %167 = vector.shape_cast %166 : vector<1x1x32xf32> to vector<1x32xf32>
    %cst_71 = arith.constant dense<0.000000e+00> : vector<8xf32>
    %168 = vector.multi_reduction <add>, %163, %cst_71 [1] : vector<8x32xf32> to vector<8xf32>
    %169 = vector.shape_cast %168 : vector<8xf32> to vector<8x1xf32>
    %cst_72 = arith.constant 3.200000e+01 : f32
    %170 = vector.broadcast %cst_72 : f32 to vector<8x1xf32>
    %171 = arith.divf %169, %170 : vector<8x1xf32>
    %172 = vector.broadcast %171 : vector<8x1xf32> to vector<8x32xf32>
    %173 = arith.subf %163, %172 : vector<8x32xf32>
    %174 = arith.mulf %173, %173 : vector<8x32xf32>
    %cst_73 = arith.constant dense<0.000000e+00> : vector<8xf32>
    %175 = vector.multi_reduction <add>, %174, %cst_73 [1] : vector<8x32xf32> to vector<8xf32>
    %176 = vector.shape_cast %175 : vector<8xf32> to vector<8x1xf32>
    %cst_74 = arith.constant 3.200000e+01 : f32
    %177 = vector.broadcast %cst_74 : f32 to vector<8x1xf32>
    %178 = arith.divf %176, %177 : vector<8x1xf32>
    %179 = vector.broadcast %171 : vector<8x1xf32> to vector<8x32xf32>
    %180 = arith.subf %163, %179 : vector<8x32xf32>
    %cst_75 = arith.constant 9.99999974E-6 : f32
    %181 = vector.broadcast %cst_75 : f32 to vector<8x1xf32>
    %182 = arith.addf %178, %181 : vector<8x1xf32>
    %183 = math.rsqrt %182 : vector<8x1xf32>
    %184 = vector.broadcast %183 : vector<8x1xf32> to vector<8x32xf32>
    %185 = arith.mulf %180, %184 : vector<8x32xf32>
    %186 = vector.broadcast %165 : vector<1x32xf32> to vector<8x32xf32>
    %187 = arith.mulf %185, %186 : vector<8x32xf32>
    %188 = vector.broadcast %167 : vector<1x32xf32> to vector<8x32xf32>
    %189 = arith.addf %187, %188 : vector<8x32xf32>
    %190 = arith.index_cast %arg1 : i32 to index
    %c0_76 = arith.constant 0 : index
    %c0_77 = arith.constant 0 : index
    %191 = vector.load %arg28[%190, %c0_76, %c0_77] : memref<2x8x32xf32, #tpu.memory_space<vmem>>, vector<1x8x32xf32>
    %192 = vector.shape_cast %191 : vector<1x8x32xf32> to vector<8x32xf32>
    %193 = vector.shape_cast %189 : vector<8x32xf32> to vector<1x8x32xf32>
    tpu.vector_store %arg28[%190, %c0_76, %c0_77], %193 {strides = array<i32>} : memref<2x8x32xf32, #tpu.memory_space<vmem>>, vector<1x8x32xf32>,
    %c1_i32 = arith.constant 1 : i32
    %194 = arith.cmpi eq, %arg0, %c1_i32 : i32
    %195 = arith.extui %194 : i1 to i32
    %c0_i32_78 = arith.constant 0 : i32
    %196 = arith.cmpi ne, %195, %c0_i32_78 : i32
    scf.if %196 {
      %c0_79 = arith.constant 0 : index
      %c0_80 = arith.constant 0 : index
      %197 = vector.load %arg19[%c0_79, %c0_80] : memref<1x32xf32, #tpu.memory_space<vmem>>, vector<1x32xf32>
      %c0_81 = arith.constant 0 : index
      %c0_82 = arith.constant 0 : index
      %198 = vector.load %arg20[%c0_81, %c0_82] : memref<1x32xf32, #tpu.memory_space<vmem>>, vector<1x32xf32>
      %cst_83 = arith.constant dense<0.000000e+00> : vector<8xf32>
      %199 = vector.multi_reduction <add>, %189, %cst_83 [1] : vector<8x32xf32> to vector<8xf32>
      %200 = vector.shape_cast %199 : vector<8xf32> to vector<8x1xf32>
      %cst_84 = arith.constant 3.200000e+01 : f32
      %201 = vector.broadcast %cst_84 : f32 to vector<8x1xf32>
      %202 = arith.divf %200, %201 : vector<8x1xf32>
      %203 = vector.broadcast %202 : vector<8x1xf32> to vector<8x32xf32>
      %204 = arith.subf %189, %203 : vector<8x32xf32>
      %205 = arith.mulf %204, %204 : vector<8x32xf32>
      %cst_85 = arith.constant dense<0.000000e+00> : vector<8xf32>
      %206 = vector.multi_reduction <add>, %205, %cst_85 [1] : vector<8x32xf32> to vector<8xf32>
      %207 = vector.shape_cast %206 : vector<8xf32> to vector<8x1xf32>
      %cst_86 = arith.constant 3.200000e+01 : f32
      %208 = vector.broadcast %cst_86 : f32 to vector<8x1xf32>
      %209 = arith.divf %207, %208 : vector<8x1xf32>
      %210 = vector.broadcast %202 : vector<8x1xf32> to vector<8x32xf32>
      %211 = arith.subf %189, %210 : vector<8x32xf32>
      %cst_87 = arith.constant 9.99999974E-6 : f32
      %212 = vector.broadcast %cst_87 : f32 to vector<8x1xf32>
      %213 = arith.addf %209, %212 : vector<8x1xf32>
      %214 = math.rsqrt %213 : vector<8x1xf32>
      %215 = vector.broadcast %214 : vector<8x1xf32> to vector<8x32xf32>
      %216 = arith.mulf %211, %215 : vector<8x32xf32>
      %217 = vector.broadcast %197 : vector<1x32xf32> to vector<8x32xf32>
      %218 = arith.mulf %216, %217 : vector<8x32xf32>
      %219 = vector.broadcast %198 : vector<1x32xf32> to vector<8x32xf32>
      %220 = arith.addf %218, %219 : vector<8x32xf32>
      %221 = arith.truncf %220 : vector<8x32xf32> to vector<8x32xbf16>
      %c0_88 = arith.constant 0 : index
      %c0_89 = arith.constant 0 : index
      %222 = vector.load %arg21[%c0_88, %c0_89] : memref<32x128xbf16, #tpu.memory_space<vmem>>, vector<32x128xbf16>
      %cst_90 = arith.constant dense<0.000000e+00> : vector<8x128xf32>
      %223 = tpu.matmul %221, %222, %cst_90 {dimension_numbers = #tpu.dot_dimension_numbers<[1], [0], [0], [1], [0, 0, 1, 1], [], []>} : vector<8x32xbf16>, vector<32x128xbf16>, vector<8x128xf32> -> vector<8x128xf32>
      %c0_91 = arith.constant 0 : index
      %c0_92 = arith.constant 0 : index
      %224 = vector.load %arg22[%c0_91, %c0_92] : memref<1x128xf32, #tpu.memory_space<vmem>>, vector<1x128xf32>
      %225 = vector.broadcast %224 : vector<1x128xf32> to vector<8x128xf32>
      %226 = arith.addf %223, %225 : vector<8x128xf32>
      %c0_93 = arith.constant 0 : index
      %c0_94 = arith.constant 0 : index
      %227 = vector.load %arg23[%c0_93, %c0_94] : memref<32x128xbf16, #tpu.memory_space<vmem>>, vector<32x128xbf16>
      %cst_95 = arith.constant dense<0.000000e+00> : vector<8x128xf32>
      %228 = tpu.matmul %221, %227, %cst_95 {dimension_numbers = #tpu.dot_dimension_numbers<[1], [0], [0], [1], [0, 0, 1, 1], [], []>} : vector<8x32xbf16>, vector<32x128xbf16>, vector<8x128xf32> -> vector<8x128xf32>
      %c0_96 = arith.constant 0 : index
      %c0_97 = arith.constant 0 : index
      %229 = vector.load %arg24[%c0_96, %c0_97] : memref<1x128xf32, #tpu.memory_space<vmem>>, vector<1x128xf32>
      %230 = vector.broadcast %229 : vector<1x128xf32> to vector<8x128xf32>
      %231 = arith.addf %228, %230 : vector<8x128xf32>
      %cst_98 = arith.constant 0.000000e+00 : f32
      %232 = vector.broadcast %cst_98 : f32 to vector<8x128xf32>
      %233 = arith.maximumf %231, %232 : vector<8x128xf32>
      %234 = arith.truncf %233 : vector<8x128xf32> to vector<8x128xbf16>
      %c0_99 = arith.constant 0 : index
      %c0_100 = arith.constant 0 : index
      %235 = vector.load %arg25[%c0_99, %c0_100] : memref<128x128xbf16, #tpu.memory_space<vmem>>, vector<128x128xbf16>
      %cst_101 = arith.constant dense<0.000000e+00> : vector<8x128xf32>
      %236 = tpu.matmul %234, %235, %cst_101 {dimension_numbers = #tpu.dot_dimension_numbers<[1], [0], [0], [1], [0, 0, 1, 1], [], []>} : vector<8x128xbf16>, vector<128x128xbf16>, vector<8x128xf32> -> vector<8x128xf32>
      %c0_102 = arith.constant 0 : index
      %c0_103 = arith.constant 0 : index
      %237 = vector.load %arg26[%c0_102, %c0_103] : memref<1x128xf32, #tpu.memory_space<vmem>>, vector<1x128xf32>
      %238 = vector.broadcast %237 : vector<1x128xf32> to vector<8x128xf32>
      %239 = arith.addf %236, %238 : vector<8x128xf32>
      %240 = math.tanh %239 : vector<8x128xf32>
      %241 = arith.addf %226, %240 : vector<8x128xf32>
      %c0_104 = arith.constant 0 : index
      %c0_105 = arith.constant 0 : index
      %c0_106 = arith.constant 0 : index
      %242 = vector.load %arg27[%c0_104, %c0_105, %c0_106] : memref<1x8x128xf32, #tpu.memory_space<vmem>>, vector<1x8x128xf32>
      %243 = vector.shape_cast %242 : vector<1x8x128xf32> to vector<8x128xf32>
      %244 = vector.shape_cast %241 : vector<8x128xf32> to vector<1x8x128xf32>
      tpu.vector_store %arg27[%c0_104, %c0_105, %c0_106], %244 {strides = array<i32>} : memref<1x8x128xf32, #tpu.memory_space<vmem>>, vector<1x8x128xf32>,
    } else {
    }
    return
  }
  func.func @transform_0(%arg0: i32, %arg1: i32) -> (i32, i32, i32) {
    %c0_i32 = arith.constant 0 : i32
    %c0_i32_0 = arith.constant 0 : i32
    %c0_i32_1 = arith.constant 0 : i32
    return %arg1, %c0_i32, %c0_i32_0 : i32, i32, i32
  }
  func.func @transform_1(%arg0: i32, %arg1: i32) -> (i32, i32) {
    %c0_i32 = arith.constant 0 : i32
    %c0_i32_0 = arith.constant 0 : i32
    %c0_i32_1 = arith.constant 0 : i32
    return %c0_i32, %c0_i32_0 : i32, i32
  }
  func.func @transform_2(%arg0: i32, %arg1: i32) -> (i32, i32) {
    %c0_i32 = arith.constant 0 : i32
    %c0_i32_0 = arith.constant 0 : i32
    %c0_i32_1 = arith.constant 0 : i32
    return %c0_i32, %c0_i32_0 : i32, i32
  }
  func.func @transform_3(%arg0: i32, %arg1: i32) -> (i32, i32) {
    %c0_i32 = arith.constant 0 : i32
    %c0_i32_0 = arith.constant 0 : i32
    %c0_i32_1 = arith.constant 0 : i32
    return %c0_i32, %c0_i32_0 : i32, i32
  }
  func.func @transform_4(%arg0: i32, %arg1: i32) -> (i32, i32) {
    %c0_i32 = arith.constant 0 : i32
    %c0_i32_0 = arith.constant 0 : i32
    %c0_i32_1 = arith.constant 0 : i32
    return %c0_i32, %c0_i32_0 : i32, i32
  }
  func.func @transform_5(%arg0: i32, %arg1: i32) -> (i32, i32, i32) {
    %c0_i32 = arith.constant 0 : i32
    %c0_i32_0 = arith.constant 0 : i32
    %c0_i32_1 = arith.constant 0 : i32
    return %arg0, %c0_i32, %c0_i32_0 : i32, i32, i32
  }
  func.func @transform_6(%arg0: i32, %arg1: i32) -> (i32, i32, i32) {
    %c0_i32 = arith.constant 0 : i32
    %c0_i32_0 = arith.constant 0 : i32
    %c0_i32_1 = arith.constant 0 : i32
    return %arg0, %c0_i32, %c0_i32_0 : i32, i32, i32
  }
  func.func @transform_7(%arg0: i32, %arg1: i32) -> (i32, i32, i32) {
    %c0_i32 = arith.constant 0 : i32
    %c0_i32_0 = arith.constant 0 : i32
    %c0_i32_1 = arith.constant 0 : i32
    return %arg0, %c0_i32, %c0_i32_0 : i32, i32, i32
  }
  func.func @transform_8(%arg0: i32, %arg1: i32) -> (i32, i32, i32) {
    %c0_i32 = arith.constant 0 : i32
    %c0_i32_0 = arith.constant 0 : i32
    %c0_i32_1 = arith.constant 0 : i32
    return %arg0, %c0_i32, %c0_i32_0 : i32, i32, i32
  }
  func.func @transform_9(%arg0: i32, %arg1: i32) -> (i32, i32, i32) {
    %c0_i32 = arith.constant 0 : i32
    %c0_i32_0 = arith.constant 0 : i32
    %c0_i32_1 = arith.constant 0 : i32
    return %arg0, %c0_i32, %c0_i32_0 : i32, i32, i32
  }
  func.func @transform_10(%arg0: i32, %arg1: i32) -> (i32, i32, i32) {
    %c0_i32 = arith.constant 0 : i32
    %c0_i32_0 = arith.constant 0 : i32
    %c0_i32_1 = arith.constant 0 : i32
    return %arg0, %c0_i32, %c0_i32_0 : i32, i32, i32
  }
  func.func @transform_11(%arg0: i32, %arg1: i32) -> (i32, i32, i32) {
    %c0_i32 = arith.constant 0 : i32
    %c0_i32_0 = arith.constant 0 : i32
    %c0_i32_1 = arith.constant 0 : i32
    return %arg0, %c0_i32, %c0_i32_0 : i32, i32, i32
  }
  func.func @transform_12(%arg0: i32, %arg1: i32) -> (i32, i32, i32) {
    %c0_i32 = arith.constant 0 : i32
    %c0_i32_0 = arith.constant 0 : i32
    %c0_i32_1 = arith.constant 0 : i32
    return %arg0, %c0_i32, %c0_i32_0 : i32, i32, i32
  }
  func.func @transform_13(%arg0: i32, %arg1: i32) -> (i32, i32, i32) {
    %c0_i32 = arith.constant 0 : i32
    %c0_i32_0 = arith.constant 0 : i32
    %c0_i32_1 = arith.constant 0 : i32
    return %arg0, %c0_i32, %c0_i32_0 : i32, i32, i32
  }
  func.func @transform_14(%arg0: i32, %arg1: i32) -> (i32, i32, i32) {
    %c0_i32 = arith.constant 0 : i32
    %c0_i32_0 = arith.constant 0 : i32
    %c0_i32_1 = arith.constant 0 : i32
    return %arg0, %c0_i32, %c0_i32_0 : i32, i32, i32
  }
  func.func @transform_15(%arg0: i32, %arg1: i32) -> (i32, i32, i32) {
    %c0_i32 = arith.constant 0 : i32
    %c0_i32_0 = arith.constant 0 : i32
    %c0_i32_1 = arith.constant 0 : i32
    return %arg0, %c0_i32, %c0_i32_0 : i32, i32, i32
  }
  func.func @transform_16(%arg0: i32, %arg1: i32) -> (i32, i32, i32) {
    %c0_i32 = arith.constant 0 : i32
    %c0_i32_0 = arith.constant 0 : i32
    %c0_i32_1 = arith.constant 0 : i32
    return %arg0, %c0_i32, %c0_i32_0 : i32, i32, i32
  }
  func.func @transform_17(%arg0: i32, %arg1: i32) -> (i32, i32) {
    %c0_i32 = arith.constant 0 : i32
    %c0_i32_0 = arith.constant 0 : i32
    %c0_i32_1 = arith.constant 0 : i32
    return %c0_i32, %c0_i32_0 : i32, i32
  }
  func.func @transform_18(%arg0: i32, %arg1: i32) -> (i32, i32) {
    %c0_i32 = arith.constant 0 : i32
    %c0_i32_0 = arith.constant 0 : i32
    %c0_i32_1 = arith.constant 0 : i32
    return %c0_i32, %c0_i32_0 : i32, i32
  }
  func.func @transform_19(%arg0: i32, %arg1: i32) -> (i32, i32) {
    %c0_i32 = arith.constant 0 : i32
    %c0_i32_0 = arith.constant 0 : i32
    %c0_i32_1 = arith.constant 0 : i32
    return %c0_i32, %c0_i32_0 : i32, i32
  }
  func.func @transform_20(%arg0: i32, %arg1: i32) -> (i32, i32) {
    %c0_i32 = arith.constant 0 : i32
    %c0_i32_0 = arith.constant 0 : i32
    %c0_i32_1 = arith.constant 0 : i32
    return %c0_i32, %c0_i32_0 : i32, i32
  }
  func.func @transform_21(%arg0: i32, %arg1: i32) -> (i32, i32) {
    %c0_i32 = arith.constant 0 : i32
    %c0_i32_0 = arith.constant 0 : i32
    %c0_i32_1 = arith.constant 0 : i32
    return %c0_i32, %c0_i32_0 : i32, i32
  }
  func.func @transform_22(%arg0: i32, %arg1: i32) -> (i32, i32) {
    %c0_i32 = arith.constant 0 : i32
    %c0_i32_0 = arith.constant 0 : i32
    %c0_i32_1 = arith.constant 0 : i32
    return %c0_i32, %c0_i32_0 : i32, i32
  }
  func.func @transform_23(%arg0: i32, %arg1: i32) -> (i32, i32) {
    %c0_i32 = arith.constant 0 : i32
    %c0_i32_0 = arith.constant 0 : i32
    %c0_i32_1 = arith.constant 0 : i32
    return %c0_i32, %c0_i32_0 : i32, i32
  }
  func.func @transform_24(%arg0: i32, %arg1: i32) -> (i32, i32) {
    %c0_i32 = arith.constant 0 : i32
    %c0_i32_0 = arith.constant 0 : i32
    %c0_i32_1 = arith.constant 0 : i32
    return %c0_i32, %c0_i32_0 : i32, i32
  }
  func.func @transform_25(%arg0: i32, %arg1: i32) -> (i32, i32, i32) {
    %c0_i32 = arith.constant 0 : i32
    %c0_i32_0 = arith.constant 0 : i32
    %c0_i32_1 = arith.constant 0 : i32
    return %arg1, %c0_i32, %c0_i32_0 : i32, i32, i32
  }
}

</mosaic_0001>

<llo_original>
// kernel: tpu_custom_call.1
$region0: #{tpu_custom_call.1}
  #allocation0 [shape = 'u32[]', space=smem, size = 0x4, offset = 0x4, fixed_abs, tag = 'smem constant byte address 0x4 - core index']
  #allocation1 [shape = 'u32[72,128]{1,0:T(1,128)}', space=vmem, size = 0x9000, scoped, tag = 'internal scratch']
  #allocation2 [shape = 'f32[2,8,32]{2,1,0:T(8,128)}', space=vmem, size = 0x2000, scoped, tag = 'scratch operand']
  %s0 = inlined_call_operand.hbm [shape: f32[2,1,8], index: 0, kind: input, shape index: {}]
  %s1 = inlined_call_operand.hbm [shape: bf16[8,32], index: 1, kind: input, shape index: {}]
  %s2 = inlined_call_operand.vmem [shape: f32[1,32], index: 2, kind: input, shape index: {}]
  %s3 = inlined_call_operand.hbm [shape: f32[8,32], index: 3, kind: input, shape index: {}]
  %s4 = inlined_call_operand.hbm [shape: f32[8,32], index: 4, kind: input, shape index: {}]
  %s5 = inlined_call_operand.vmem [shape: bf16[2,32,96], index: 5, kind: input, shape index: {}]
  %s6 = inlined_call_operand.hbm [shape: f32[2,1,96], index: 6, kind: input, shape index: {}]
  %s7 = inlined_call_operand.vmem [shape: bf16[2,32,32], index: 7, kind: input, shape index: {}]
  %s8 = inlined_call_operand.hbm [shape: f32[2,1,32], index: 8, kind: input, shape index: {}]
  %s9 = inlined_call_operand.hbm [shape: f32[2,1,32], index: 9, kind: input, shape index: {}]
  %s10 = inlined_call_operand.hbm [shape: f32[2,1,32], index: 10, kind: input, shape index: {}]
  %s11 = inlined_call_operand.vmem [shape: bf16[2,32,128], index: 11, kind: input, shape index: {}]
  %s12 = inlined_call_operand.hbm [shape: f32[2,1,128], index: 12, kind: input, shape index: {}]
  %s13 = inlined_call_operand.vmem [shape: bf16[2,128,32], index: 13, kind: input, shape index: {}]
  %s14 = inlined_call_operand.hbm [shape: f32[2,1,32], index: 14, kind: input, shape index: {}]
  %s15 = inlined_call_operand.hbm [shape: f32[2,1,32], index: 15, kind: input, shape index: {}]
  %s16 = inlined_call_operand.hbm [shape: f32[2,1,32], index: 16, kind: input, shape index: {}]
  %s17 = inlined_call_operand.hbm [shape: f32[1,32], index: 17, kind: input, shape index: {}]
  %s18 = inlined_call_operand.hbm [shape: f32[1,32], index: 18, kind: input, shape index: {}]
  %s19 = inlined_call_operand.vmem [shape: bf16[32,128], index: 19, kind: input, shape index: {}]
  %s20 = inlined_call_operand.vmem [shape: f32[1,128], index: 20, kind: input, shape index: {}]
  %s21 = inlined_call_operand.hbm [shape: bf16[32,128], index: 21, kind: input, shape index: {}]
  %s22 = inlined_call_operand.vmem [shape: f32[1,128], index: 22, kind: input, shape index: {}]
  %s23 = inlined_call_operand.vmem [shape: bf16[128,128], index: 23, kind: input, shape index: {}]
  %s24 = inlined_call_operand.vmem [shape: f32[1,128], index: 24, kind: input, shape index: {}]
  %s25 = inlined_call_operand.hbm [shape: f32[2,8,128], index: 25, kind: output, shape index: {}]
  %s26 = sld [smem:[#allocation0]]
  $region201: #{tpu_custom_call.1} parent=0
    _
  %s28 = ssub.s32 1, %s26
  %s29 = scalar_select 0, %s28, %s26
  $region1: #{tpu_custom_call.1} parent=0
    #allocation3 [shape = 'u8[1024]{0}', space=vmem, size = 0x400, scoped, tag = 'input window, operand 0']
    #allocation4 [shape = 's32[2]{0}', space=sflag, size = 0x8, scoped, tag = 'scoped memory for tpu_custom_call.1']
    #allocation5 [shape = 's32[2]{0}', space=sflag, size = 0x8, scoped, tag = 'scoped memory for tpu_custom_call.1']
    #allocation6 [shape = 'u8[2048]{0}', space=vmem, size = 0x800, scoped, tag = 'input window, operand 1, single buffered']
    #allocation7 [shape = 's32[1]{0}', space=sflag, size = 0x4, scoped, tag = 'scoped memory for tpu_custom_call.1']
    #allocation8 [shape = 'u8[4096]{0}', space=vmem, size = 0x1000, scoped, tag = 'input window, operand 3, single buffered']
    #allocation9 [shape = 'u8[4096]{0}', space=vmem, size = 0x1000, scoped, tag = 'input window, operand 4, single buffered']
    #allocation10 [shape = 's32[1]{0}', space=sflag, size = 0x4, scoped, tag = 'scoped memory for tpu_custom_call.1']
    #allocation11 [shape = 'u8[1024]{0}', space=vmem, size = 0x400, scoped, tag = 'input window, operand 6']
    #allocation12 [shape = 'u8[1024]{0}', space=vmem, size = 0x400, scoped, tag = 'input window, operand 8']
    #allocation13 [shape = 'u8[1024]{0}', space=vmem, size = 0x400, scoped, tag = 'input window, operand 9']
    #allocation14 [shape = 'u8[1024]{0}', space=vmem, size = 0x400, scoped, tag = 'input window, operand 10']
    #allocation15 [shape = 'u8[1024]{0}', space=vmem, size = 0x400, scoped, tag = 'input window, operand 12']
    #allocation16 [shape = 'u8[1024]{0}', space=vmem, size = 0x400, scoped, tag = 'input window, operand 14']
    #allocation17 [shape = 'u8[1024]{0}', space=vmem, size = 0x400, scoped, tag = 'input window, operand 15']
    #allocation18 [shape = 'u8[1024]{0}', space=vmem, size = 0x400, scoped, tag = 'input window, operand 16']
    #allocation19 [shape = 'u8[512]{0}', space=vmem, size = 0x400, scoped, tag = 'input window, operand 17, single buffered']
    #allocation20 [shape = 'u8[512]{0}', space=vmem, size = 0x400, scoped, tag = 'input window, operand 18, single buffered']
    #allocation21 [shape = 'u8[8192]{0}', space=vmem, size = 0x2000, scoped, tag = 'input window, operand 21, single buffered']
    #allocation22 [shape = 's32[1]{0}', space=sflag, size = 0x4, scoped, tag = 'scoped memory for tpu_custom_call.1']
    #allocation23 [shape = 'u8[8192]{0}', space=vmem, size = 0x2000, scoped, tag = 'output window, operand 0']
    %30 = vsyncpa [#allocation4], 0
    %s31 = scalar_lea.sflag [#allocation4], 1
    %32 = vsyncpa %s31, 0
    %33 = vsyncpa [#allocation7], 0
    %34 = vsyncpa [#allocation10], 0
    %35 = vsyncpa [#allocation22], 0
    %36 = vsyncpa [#allocation5], 0
    %s37 = scalar_lea.sflag [#allocation5], 1
    %38 = vsyncpa %s37, 0
    loop: start=0, step=1, limit=6
    $region2: #{tpu_custom_call.1} parent=1 // loop_pre_header
      _
    $region3: #{tpu_custom_call.1} parent=1 // loop_header
      %s40 = sphi 0, %s44
      %p41 = scmp.ge.s32.totalorder %s40, 6
      %s47 = sphi 0, %s59
      %s48 = sphi 0, %s55
      %s49 = sphi 0, %s47
      %s50 = sphi 0, %s48
      %s51 = sphi 0, %s49
      %s52 = sphi 0, %s50
      %s62 = sphi 0, %s64
      %s65 = sphi 0, %s62
      %s66 = sphi 0, %s65
      %s82 = sphi 0, %s66
      %s86 = sphi 0, %s86
      %s88 = sphi 0, %s86
      %s89 = sphi 0, %s88
      %s103 = sphi 0, %s89
      %s107 = sphi 0, %s107
      %s109 = sphi 0, %s107
      %s110 = sphi 0, %s109
      %s124 = sphi 0, %s110
      %s128 = sphi 0, %s128
      %s130 = sphi 0, %s128
      %s131 = sphi 0, %s130
      %s145 = sphi 0, %s131
      %s149 = sphi 0, %s149
      %s151 = sphi 0, %s149
      %s152 = sphi 0, %s151
      %s166 = sphi 0, %s152
      %s172 = sphi 0, %s174
      %s175 = sphi 0, %s172
      %s176 = sphi 0, %s175
      %s192 = sphi 0, %s176
      %s198 = sphi 0, %s200
      %s201 = sphi 0, %s198
      %s202 = sphi 0, %s201
      %s218 = sphi 0, %s202
      %s224 = sphi 0, %s226
      %s227 = sphi 0, %s224
      %s228 = sphi 0, %s227
      %s244 = sphi 0, %s228
      %s250 = sphi 0, %s252
      %s253 = sphi 0, %s250
      %s254 = sphi 0, %s253
      %s270 = sphi 0, %s254
      %s276 = sphi 0, %s278
      %s279 = sphi 0, %s276
      %s280 = sphi 0, %s279
      %s296 = sphi 0, %s280
      %s302 = sphi 0, %s304
      %s305 = sphi 0, %s302
      %s306 = sphi 0, %s305
      %s322 = sphi 0, %s306
      %s328 = sphi 0, %s330
      %s331 = sphi 0, %s328
      %s332 = sphi 0, %s331
      %s348 = sphi 0, %s332
      %s354 = sphi 0, %s356
      %s357 = sphi 0, %s354
      %s358 = sphi 0, %s357
      %s374 = sphi 0, %s358
      %s380 = sphi 0, %s382
      %s383 = sphi 0, %s380
      %s384 = sphi 0, %s383
      %s400 = sphi 0, %s384
      %s406 = sphi 0, %s408
      %s409 = sphi 0, %s406
      %s410 = sphi 0, %s409
      %s426 = sphi 0, %s410
      %s432 = sphi 0, %s434
      %s435 = sphi 0, %s432
      %s436 = sphi 0, %s435
      %s452 = sphi 0, %s436
      %s458 = sphi 0, %s460
      %s461 = sphi 0, %s458
      %s462 = sphi 0, %s461
      %s478 = sphi 0, %s462
      %s482 = sphi 0, %s482
      %s484 = sphi 0, %s482
      %s485 = sphi 0, %s484
      %s499 = sphi 0, %s485
      %s503 = sphi 0, %s503
      %s505 = sphi 0, %s503
      %s506 = sphi 0, %s505
      %s520 = sphi 0, %s506
      %s524 = sphi 0, %s524
      %s526 = sphi 0, %s524
      %s527 = sphi 0, %s526
      %s541 = sphi 0, %s527
      %s545 = sphi 0, %s545
      %s547 = sphi 0, %s545
      %s548 = sphi 0, %s547
      %s562 = sphi 0, %s548
      %s566 = sphi 0, %s566
      %s568 = sphi 0, %s566
      %s569 = sphi 0, %s568
      %s583 = sphi 0, %s569
      %s587 = sphi 0, %s587
      %s589 = sphi 0, %s587
      %s590 = sphi 0, %s589
      %s604 = sphi 0, %s590
      %s608 = sphi 0, %s608
      %s610 = sphi 0, %s608
      %s611 = sphi 0, %s610
      %s625 = sphi 0, %s611
      %s629 = sphi 0, %s629
      %s631 = sphi 0, %s629
      %s632 = sphi 0, %s631
      %s646 = sphi 0, %s632
      %s652 = sphi 0, %s654
      %s655 = sphi 0, %s652
      %s656 = sphi 0, %s655
      %s672 = sphi 0, %s656
    $region4: #{tpu_custom_call.1} parent=1 // loop_header_branch
      %43 = sbr.rel (%p41) target = $region8
    $region5: #{tpu_custom_call.1} parent=1 // loop_body
      %s45 = ssub.s32 %s40, 1
      %s46 = ssub.s32 %s40, 2
      %s53 = sadd.s32 1, %s48
      %p54 = scmp.ge.s32.totalorder %s53, 2
      %s55 = scalar_select %p54, 0, %s53
      %s56 = sadd.s32 1, %s47
      %s57 = scalar_select %p54, %s56, %s47
      %p58 = scmp.ge.s32.totalorder %s57, 2
      %s59 = scalar_select %p58, 0, %s57
      %s60 = ssub.s32 %s48, %s55
      %p61 = scmp.eq.s32.totalorder %s60, 0
      %s63 = sadd.s32 %s62, 1
      %s64 = scalar_select %p61, %s62, %s63
      %p67 = pneg %p61
      %p68 = scmp.eq.s32.totalorder %s40, 3
      %p69 = por %p67, %p68
      %p70 = scmp.ne.s32.totalorder %s62, %s65
      %p71 = scmp.eq.s32.totalorder %s40, 0
      %p72 = por %p70, %p71
      %p73 = scmp.ne.s32.totalorder %s62, %s65
      %p74 = scmp.eq.s32.totalorder %s45, 3
      %p75 = por %p73, %p74
      %p76 = scmp.ne.s32.totalorder %s65, %s66
      %p77 = scmp.eq.s32.totalorder %s45, 0
      %p78 = por %p76, %p77
      %p79 = scmp.ne.s32.totalorder %s65, %s66
      %p80 = scmp.eq.s32.totalorder %s46, 3
      %p81 = por %p79, %p80
      %p83 = scmp.ne.s32.totalorder %s66, %s82
      %p84 = scmp.eq.s32.totalorder %s46, 0
      %p85 = por %p83, %p84
      %s87 = sadd.s32 %s86, 1
      %p90 = scmp.eq.s32.totalorder %s40, 3
      %p91 = scmp.ne.s32.totalorder %s86, %s88
      %p92 = scmp.eq.s32.totalorder %s40, 0
      %p93 = por %p91, %p92
      %p94 = scmp.ne.s32.totalorder %s86, %s88
      %p95 = scmp.eq.s32.totalorder %s45, 3
      %p96 = por %p94, %p95
      %p97 = scmp.ne.s32.totalorder %s88, %s89
      %p98 = scmp.eq.s32.totalorder %s45, 0
      %p99 = por %p97, %p98
      %p100 = scmp.ne.s32.totalorder %s88, %s89
      %p101 = scmp.eq.s32.totalorder %s46, 3
      %p102 = por %p100, %p101
      %p104 = scmp.ne.s32.totalorder %s89, %s103
      %p105 = scmp.eq.s32.totalorder %s46, 0
      %p106 = por %p104, %p105
      %s108 = sadd.s32 %s107, 1
      %p111 = scmp.eq.s32.totalorder %s40, 3
      %p112 = scmp.ne.s32.totalorder %s107, %s109
      %p113 = scmp.eq.s32.totalorder %s40, 0
      %p114 = por %p112, %p113
      %p115 = scmp.ne.s32.totalorder %s107, %s109
      %p116 = scmp.eq.s32.totalorder %s45, 3
      %p117 = por %p115, %p116
      %p118 = scmp.ne.s32.totalorder %s109, %s110
      %p119 = scmp.eq.s32.totalorder %s45, 0
      %p120 = por %p118, %p119
      %p121 = scmp.ne.s32.totalorder %s109, %s110
      %p122 = scmp.eq.s32.totalorder %s46, 3
      %p123 = por %p121, %p122
      %p125 = scmp.ne.s32.totalorder %s110, %s124
      %p126 = scmp.eq.s32.totalorder %s46, 0
      %p127 = por %p125, %p126
      %s129 = sadd.s32 %s128, 1
      %p132 = scmp.eq.s32.totalorder %s40, 3
      %p133 = scmp.ne.s32.totalorder %s128, %s130
      %p134 = scmp.eq.s32.totalorder %s40, 0
      %p135 = por %p133, %p134
      %p136 = scmp.ne.s32.totalorder %s128, %s130
      %p137 = scmp.eq.s32.totalorder %s45, 3
      %p138 = por %p136, %p137
      %p139 = scmp.ne.s32.totalorder %s130, %s131
      %p140 = scmp.eq.s32.totalorder %s45, 0
      %p141 = por %p139, %p140
      %p142 = scmp.ne.s32.totalorder %s130, %s131
      %p143 = scmp.eq.s32.totalorder %s46, 3
      %p144 = por %p142, %p143
      %p146 = scmp.ne.s32.totalorder %s131, %s145
      %p147 = scmp.eq.s32.totalorder %s46, 0
      %p148 = por %p146, %p147
      %s150 = sadd.s32 %s149, 1
      %p153 = scmp.eq.s32.totalorder %s40, 3
      %p154 = scmp.ne.s32.totalorder %s149, %s151
      %p155 = scmp.eq.s32.totalorder %s40, 0
      %p156 = por %p154, %p155
      %p157 = scmp.ne.s32.totalorder %s149, %s151
      %p158 = scmp.eq.s32.totalorder %s45, 3
      %p159 = por %p157, %p158
      %p160 = scmp.ne.s32.totalorder %s151, %s152
      %p161 = scmp.eq.s32.totalorder %s45, 0
      %p162 = por %p160, %p161
      %p163 = scmp.ne.s32.totalorder %s151, %s152
      %p164 = scmp.eq.s32.totalorder %s46, 3
      %p165 = por %p163, %p164
      %p167 = scmp.ne.s32.totalorder %s152, %s166
      %p168 = scmp.eq.s32.totalorder %s46, 0
      %p169 = por %p167, %p168
      %s170 = ssub.s32 %s47, %s59
      %p171 = scmp.eq.s32.totalorder %s170, 0
      %s173 = sadd.s32 %s172, 1
      %s174 = scalar_select %p171, %s172, %s173
      %p177 = pneg %p171
      %p178 = scmp.eq.s32.totalorder %s40, 3
      %p179 = por %p177, %p178
      %p180 = scmp.ne.s32.totalorder %s172, %s175
      %p181 = scmp.eq.s32.totalorder %s40, 0
      %p182 = por %p180, %p181
      %p183 = scmp.ne.s32.totalorder %s172, %s175
      %p184 = scmp.eq.s32.totalorder %s45, 3
      %p185 = por %p183, %p184
      %p186 = scmp.ne.s32.totalorder %s175, %s176
      %p187 = scmp.eq.s32.totalorder %s45, 0
      %p188 = por %p186, %p187
      %p189 = scmp.ne.s32.totalorder %s175, %s176
      %p190 = scmp.eq.s32.totalorder %s46, 3
      %p191 = por %p189, %p190
      %p193 = scmp.ne.s32.totalorder %s176, %s192
      %p194 = scmp.eq.s32.totalorder %s46, 0
      %p195 = por %p193, %p194
      %s196 = ssub.s32 %s47, %s59
      %p197 = scmp.eq.s32.totalorder %s196, 0
      %s199 = sadd.s32 %s198, 1
      %s200 = scalar_select %p197, %s198, %s199
      %p203 = pneg %p197
      %p204 = scmp.eq.s32.totalorder %s40, 3
      %p205 = por %p203, %p204
      %p206 = scmp.ne.s32.totalorder %s198, %s201
      %p207 = scmp.eq.s32.totalorder %s40, 0
      %p208 = por %p206, %p207
      %p209 = scmp.ne.s32.totalorder %s198, %s201
      %p210 = scmp.eq.s32.totalorder %s45, 3
      %p211 = por %p209, %p210
      %p212 = scmp.ne.s32.totalorder %s201, %s202
      %p213 = scmp.eq.s32.totalorder %s45, 0
      %p214 = por %p212, %p213
      %p215 = scmp.ne.s32.totalorder %s201, %s202
      %p216 = scmp.eq.s32.totalorder %s46, 3
      %p217 = por %p215, %p216
      %p219 = scmp.ne.s32.totalorder %s202, %s218
      %p220 = scmp.eq.s32.totalorder %s46, 0
      %p221 = por %p219, %p220
      %s222 = ssub.s32 %s47, %s59
      %p223 = scmp.eq.s32.totalorder %s222, 0
      %s225 = sadd.s32 %s224, 1
      %s226 = scalar_select %p223, %s224, %s225
      %p229 = pneg %p223
      %p230 = scmp.eq.s32.totalorder %s40, 3
      %p231 = por %p229, %p230
      %p232 = scmp.ne.s32.totalorder %s224, %s227
      %p233 = scmp.eq.s32.totalorder %s40, 0
      %p234 = por %p232, %p233
      %p235 = scmp.ne.s32.totalorder %s224, %s227
      %p236 = scmp.eq.s32.totalorder %s45, 3
      %p237 = por %p235, %p236
      %p238 = scmp.ne.s32.totalorder %s227, %s228
      %p239 = scmp.eq.s32.totalorder %s45, 0
      %p240 = por %p238, %p239
      %p241 = scmp.ne.s32.totalorder %s227, %s228
      %p242 = scmp.eq.s32.totalorder %s46, 3
      %p243 = por %p241, %p242
      %p245 = scmp.ne.s32.totalorder %s228, %s244
      %p246 = scmp.eq.s32.totalorder %s46, 0
      %p247 = por %p245, %p246
      %s248 = ssub.s32 %s47, %s59
      %p249 = scmp.eq.s32.totalorder %s248, 0
      %s251 = sadd.s32 %s250, 1
      %s252 = scalar_select %p249, %s250, %s251
      %p255 = pneg %p249
      %p256 = scmp.eq.s32.totalorder %s40, 3
      %p257 = por %p255, %p256
      %p258 = scmp.ne.s32.totalorder %s250, %s253
      %p259 = scmp.eq.s32.totalorder %s40, 0
      %p260 = por %p258, %p259
      %p261 = scmp.ne.s32.totalorder %s250, %s253
      %p262 = scmp.eq.s32.totalorder %s45, 3
      %p263 = por %p261, %p262
      %p264 = scmp.ne.s32.totalorder %s253, %s254
      %p265 = scmp.eq.s32.totalorder %s45, 0
      %p266 = por %p264, %p265
      %p267 = scmp.ne.s32.totalorder %s253, %s254
      %p268 = scmp.eq.s32.totalorder %s46, 3
      %p269 = por %p267, %p268
      %p271 = scmp.ne.s32.totalorder %s254, %s270
      %p272 = scmp.eq.s32.totalorder %s46, 0
      %p273 = por %p271, %p272
      %s274 = ssub.s32 %s47, %s59
      %p275 = scmp.eq.s32.totalorder %s274, 0
      %s277 = sadd.s32 %s276, 1
      %s278 = scalar_select %p275, %s276, %s277
      %p281 = pneg %p275
      %p282 = scmp.eq.s32.totalorder %s40, 3
      %p283 = por %p281, %p282
      %p284 = scmp.ne.s32.totalorder %s276, %s279
      %p285 = scmp.eq.s32.totalorder %s40, 0
      %p286 = por %p284, %p285
      %p287 = scmp.ne.s32.totalorder %s276, %s279
      %p288 = scmp.eq.s32.totalorder %s45, 3
      %p289 = por %p287, %p288
      %p290 = scmp.ne.s32.totalorder %s279, %s280
      %p291 = scmp.eq.s32.totalorder %s45, 0
      %p292 = por %p290, %p291
      %p293 = scmp.ne.s32.totalorder %s279, %s280
      %p294 = scmp.eq.s32.totalorder %s46, 3
      %p295 = por %p293, %p294
      %p297 = scmp.ne.s32.totalorder %s280, %s296
      %p298 = scmp.eq.s32.totalorder %s46, 0
      %p299 = por %p297, %p298
      %s300 = ssub.s32 %s47, %s59
      %p301 = scmp.eq.s32.totalorder %s300, 0
      %s303 = sadd.s32 %s302, 1
      %s304 = scalar_select %p301, %s302, %s303
      %p307 = pneg %p301
      %p308 = scmp.eq.s32.totalorder %s40, 3
      %p309 = por %p307, %p308
      %p310 = scmp.ne.s32.totalorder %s302, %s305
      %p311 = scmp.eq.s32.totalorder %s40, 0
      %p312 = por %p310, %p311
      %p313 = scmp.ne.s32.totalorder %s302, %s305
      %p314 = scmp.eq.s32.totalorder %s45, 3
      %p315 = por %p313, %p314
      %p316 = scmp.ne.s32.totalorder %s305, %s306
      %p317 = scmp.eq.s32.totalorder %s45, 0
      %p318 = por %p316, %p317
      %p319 = scmp.ne.s32.totalorder %s305, %s306
      %p320 = scmp.eq.s32.totalorder %s46, 3
      %p321 = por %p319, %p320
      %p323 = scmp.ne.s32.totalorder %s306, %s322
      %p324 = scmp.eq.s32.totalorder %s46, 0
      %p325 = por %p323, %p324
      %s326 = ssub.s32 %s47, %s59
      %p327 = scmp.eq.s32.totalorder %s326, 0
      %s329 = sadd.s32 %s328, 1
      %s330 = scalar_select %p327, %s328, %s329
      %p333 = pneg %p327
      %p334 = scmp.eq.s32.totalorder %s40, 3
      %p335 = por %p333, %p334
      %p336 = scmp.ne.s32.totalorder %s328, %s331
      %p337 = scmp.eq.s32.totalorder %s40, 0
      %p338 = por %p336, %p337
      %p339 = scmp.ne.s32.totalorder %s328, %s331
      %p340 = scmp.eq.s32.totalorder %s45, 3
      %p341 = por %p339, %p340
      %p342 = scmp.ne.s32.totalorder %s331, %s332
      %p343 = scmp.eq.s32.totalorder %s45, 0
      %p344 = por %p342, %p343
      %p345 = scmp.ne.s32.totalorder %s331, %s332
      %p346 = scmp.eq.s32.totalorder %s46, 3
      %p347 = por %p345, %p346
      %p349 = scmp.ne.s32.totalorder %s332, %s348
      %p350 = scmp.eq.s32.totalorder %s46, 0
      %p351 = por %p349, %p350
      %s352 = ssub.s32 %s47, %s59
      %p353 = scmp.eq.s32.totalorder %s352, 0
      %s355 = sadd.s32 %s354, 1
      %s356 = scalar_select %p353, %s354, %s355
      %p359 = pneg %p353
      %p360 = scmp.eq.s32.totalorder %s40, 3
      %p361 = por %p359, %p360
      %p362 = scmp.ne.s32.totalorder %s354, %s357
      %p363 = scmp.eq.s32.totalorder %s40, 0
      %p364 = por %p362, %p363
      %p365 = scmp.ne.s32.totalorder %s354, %s357
      %p366 = scmp.eq.s32.totalorder %s45, 3
      %p367 = por %p365, %p366
      %p368 = scmp.ne.s32.totalorder %s357, %s358
      %p369 = scmp.eq.s32.totalorder %s45, 0
      %p370 = por %p368, %p369
      %p371 = scmp.ne.s32.totalorder %s357, %s358
      %p372 = scmp.eq.s32.totalorder %s46, 3
      %p373 = por %p371, %p372
      %p375 = scmp.ne.s32.totalorder %s358, %s374
      %p376 = scmp.eq.s32.totalorder %s46, 0
      %p377 = por %p375, %p376
      %s378 = ssub.s32 %s47, %s59
      %p379 = scmp.eq.s32.totalorder %s378, 0
      %s381 = sadd.s32 %s380, 1
      %s382 = scalar_select %p379, %s380, %s381
      %p385 = pneg %p379
      %p386 = scmp.eq.s32.totalorder %s40, 3
      %p387 = por %p385, %p386
      %p388 = scmp.ne.s32.totalorder %s380, %s383
      %p389 = scmp.eq.s32.totalorder %s40, 0
      %p390 = por %p388, %p389
      %p391 = scmp.ne.s32.totalorder %s380, %s383
      %p392 = scmp.eq.s32.totalorder %s45, 3
      %p393 = por %p391, %p392
      %p394 = scmp.ne.s32.totalorder %s383, %s384
      %p395 = scmp.eq.s32.totalorder %s45, 0
      %p396 = por %p394, %p395
      %p397 = scmp.ne.s32.totalorder %s383, %s384
      %p398 = scmp.eq.s32.totalorder %s46, 3
      %p399 = por %p397, %p398
      %p401 = scmp.ne.s32.totalorder %s384, %s400
      %p402 = scmp.eq.s32.totalorder %s46, 0
      %p403 = por %p401, %p402
      %s404 = ssub.s32 %s47, %s59
      %p405 = scmp.eq.s32.totalorder %s404, 0
      %s407 = sadd.s32 %s406, 1
      %s408 = scalar_select %p405, %s406, %s407
      %p411 = pneg %p405
      %p412 = scmp.eq.s32.totalorder %s40, 3
      %p413 = por %p411, %p412
      %p414 = scmp.ne.s32.totalorder %s406, %s409
      %p415 = scmp.eq.s32.totalorder %s40, 0
      %p416 = por %p414, %p415
      %p417 = scmp.ne.s32.totalorder %s406, %s409
      %p418 = scmp.eq.s32.totalorder %s45, 3
      %p419 = por %p417, %p418
      %p420 = scmp.ne.s32.totalorder %s409, %s410
      %p421 = scmp.eq.s32.totalorder %s45, 0
      %p422 = por %p420, %p421
      %p423 = scmp.ne.s32.totalorder %s409, %s410
      %p424 = scmp.eq.s32.totalorder %s46, 3
      %p425 = por %p423, %p424
      %p427 = scmp.ne.s32.totalorder %s410, %s426
      %p428 = scmp.eq.s32.totalorder %s46, 0
      %p429 = por %p427, %p428
      %s430 = ssub.s32 %s47, %s59
      %p431 = scmp.eq.s32.totalorder %s430, 0
      %s433 = sadd.s32 %s432, 1
      %s434 = scalar_select %p431, %s432, %s433
      %p437 = pneg %p431
      %p438 = scmp.eq.s32.totalorder %s40, 3
      %p439 = por %p437, %p438
      %p440 = scmp.ne.s32.totalorder %s432, %s435
      %p441 = scmp.eq.s32.totalorder %s40, 0
      %p442 = por %p440, %p441
      %p443 = scmp.ne.s32.totalorder %s432, %s435
      %p444 = scmp.eq.s32.totalorder %s45, 3
      %p445 = por %p443, %p444
      %p446 = scmp.ne.s32.totalorder %s435, %s436
      %p447 = scmp.eq.s32.totalorder %s45, 0
      %p448 = por %p446, %p447
      %p449 = scmp.ne.s32.totalorder %s435, %s436
      %p450 = scmp.eq.s32.totalorder %s46, 3
      %p451 = por %p449, %p450
      %p453 = scmp.ne.s32.totalorder %s436, %s452
      %p454 = scmp.eq.s32.totalorder %s46, 0
      %p455 = por %p453, %p454
      %s456 = ssub.s32 %s47, %s59
      %p457 = scmp.eq.s32.totalorder %s456, 0
      %s459 = sadd.s32 %s458, 1
      %s460 = scalar_select %p457, %s458, %s459
      %p463 = pneg %p457
      %p464 = scmp.eq.s32.totalorder %s40, 3
      %p465 = por %p463, %p464
      %p466 = scmp.ne.s32.totalorder %s458, %s461
      %p467 = scmp.eq.s32.totalorder %s40, 0
      %p468 = por %p466, %p467
      %p469 = scmp.ne.s32.totalorder %s458, %s461
      %p470 = scmp.eq.s32.totalorder %s45, 3
      %p471 = por %p469, %p470
      %p472 = scmp.ne.s32.totalorder %s461, %s462
      %p473 = scmp.eq.s32.totalorder %s45, 0
      %p474 = por %p472, %p473
      %p475 = scmp.ne.s32.totalorder %s461, %s462
      %p476 = scmp.eq.s32.totalorder %s46, 3
      %p477 = por %p475, %p476
      %p479 = scmp.ne.s32.totalorder %s462, %s478
      %p480 = scmp.eq.s32.totalorder %s46, 0
      %p481 = por %p479, %p480
      %s483 = sadd.s32 %s482, 1
      %p486 = scmp.eq.s32.totalorder %s40, 3
      %p487 = scmp.ne.s32.totalorder %s482, %s484
      %p488 = scmp.eq.s32.totalorder %s40, 0
      %p489 = por %p487, %p488
      %p490 = scmp.ne.s32.totalorder %s482, %s484
      %p491 = scmp.eq.s32.totalorder %s45, 3
      %p492 = por %p490, %p491
      %p493 = scmp.ne.s32.totalorder %s484, %s485
      %p494 = scmp.eq.s32.totalorder %s45, 0
      %p495 = por %p493, %p494
      %p496 = scmp.ne.s32.totalorder %s484, %s485
      %p497 = scmp.eq.s32.totalorder %s46, 3
      %p498 = por %p496, %p497
      %p500 = scmp.ne.s32.totalorder %s485, %s499
      %p501 = scmp.eq.s32.totalorder %s46, 0
      %p502 = por %p500, %p501
      %s504 = sadd.s32 %s503, 1
      %p507 = scmp.eq.s32.totalorder %s40, 3
      %p508 = scmp.ne.s32.totalorder %s503, %s505
      %p509 = scmp.eq.s32.totalorder %s40, 0
      %p510 = por %p508, %p509
      %p511 = scmp.ne.s32.totalorder %s503, %s505
      %p512 = scmp.eq.s32.totalorder %s45, 3
      %p513 = por %p511, %p512
      %p514 = scmp.ne.s32.totalorder %s505, %s506
      %p515 = scmp.eq.s32.totalorder %s45, 0
      %p516 = por %p514, %p515
      %p517 = scmp.ne.s32.totalorder %s505, %s506
      %p518 = scmp.eq.s32.totalorder %s46, 3
      %p519 = por %p517, %p518
      %p521 = scmp.ne.s32.totalorder %s506, %s520
      %p522 = scmp.eq.s32.totalorder %s46, 0
      %p523 = por %p521, %p522
      %s525 = sadd.s32 %s524, 1
      %p528 = scmp.eq.s32.totalorder %s40, 3
      %p529 = scmp.ne.s32.totalorder %s524, %s526
      %p530 = scmp.eq.s32.totalorder %s40, 0
      %p531 = por %p529, %p530
      %p532 = scmp.ne.s32.totalorder %s524, %s526
      %p533 = scmp.eq.s32.totalorder %s45, 3
      %p534 = por %p532, %p533
      %p535 = scmp.ne.s32.totalorder %s526, %s527
      %p536 = scmp.eq.s32.totalorder %s45, 0
      %p537 = por %p535, %p536
      %p538 = scmp.ne.s32.totalorder %s526, %s527
      %p539 = scmp.eq.s32.totalorder %s46, 3
      %p540 = por %p538, %p539
      %p542 = scmp.ne.s32.totalorder %s527, %s541
      %p543 = scmp.eq.s32.totalorder %s46, 0
      %p544 = por %p542, %p543
      %s546 = sadd.s32 %s545, 1
      %p549 = scmp.eq.s32.totalorder %s40, 3
      %p550 = scmp.ne.s32.totalorder %s545, %s547
      %p551 = scmp.eq.s32.totalorder %s40, 0
      %p552 = por %p550, %p551
      %p553 = scmp.ne.s32.totalorder %s545, %s547
      %p554 = scmp.eq.s32.totalorder %s45, 3
      %p555 = por %p553, %p554
      %p556 = scmp.ne.s32.totalorder %s547, %s548
      %p557 = scmp.eq.s32.totalorder %s45, 0
      %p558 = por %p556, %p557
      %p559 = scmp.ne.s32.totalorder %s547, %s548
      %p560 = scmp.eq.s32.totalorder %s46, 3
      %p561 = por %p559, %p560
      %p563 = scmp.ne.s32.totalorder %s548, %s562
      %p564 = scmp.eq.s32.totalorder %s46, 0
      %p565 = por %p563, %p564
      %s567 = sadd.s32 %s566, 1
      %p570 = scmp.eq.s32.totalorder %s40, 3
      %p571 = scmp.ne.s32.totalorder %s566, %s568
      %p572 = scmp.eq.s32.totalorder %s40, 0
      %p573 = por %p571, %p572
      %p574 = scmp.ne.s32.totalorder %s566, %s568
      %p575 = scmp.eq.s32.totalorder %s45, 3
      %p576 = por %p574, %p575
      %p577 = scmp.ne.s32.totalorder %s568, %s569
      %p578 = scmp.eq.s32.totalorder %s45, 0
      %p579 = por %p577, %p578
      %p580 = scmp.ne.s32.totalorder %s568, %s569
      %p581 = scmp.eq.s32.totalorder %s46, 3
      %p582 = por %p580, %p581
      %p584 = scmp.ne.s32.totalorder %s569, %s583
      %p585 = scmp.eq.s32.totalorder %s46, 0
      %p586 = por %p584, %p585
      %s588 = sadd.s32 %s587, 1
      %p591 = scmp.eq.s32.totalorder %s40, 3
      %p592 = scmp.ne.s32.totalorder %s587, %s589
      %p593 = scmp.eq.s32.totalorder %s40, 0
      %p594 = por %p592, %p593
      %p595 = scmp.ne.s32.totalorder %s587, %s589
      %p596 = scmp.eq.s32.totalorder %s45, 3
      %p597 = por %p595, %p596
      %p598 = scmp.ne.s32.totalorder %s589, %s590
      %p599 = scmp.eq.s32.totalorder %s45, 0
      %p600 = por %p598, %p599
      %p601 = scmp.ne.s32.totalorder %s589, %s590
      %p602 = scmp.eq.s32.totalorder %s46, 3
      %p603 = por %p601, %p602
      %p605 = scmp.ne.s32.totalorder %s590, %s604
      %p606 = scmp.eq.s32.totalorder %s46, 0
      %p607 = por %p605, %p606
      %s609 = sadd.s32 %s608, 1
      %p612 = scmp.eq.s32.totalorder %s40, 3
      %p613 = scmp.ne.s32.totalorder %s608, %s610
      %p614 = scmp.eq.s32.totalorder %s40, 0
      %p615 = por %p613, %p614
      %p616 = scmp.ne.s32.totalorder %s608, %s610
      %p617 = scmp.eq.s32.totalorder %s45, 3
      %p618 = por %p616, %p617
      %p619 = scmp.ne.s32.totalorder %s610, %s611
      %p620 = scmp.eq.s32.totalorder %s45, 0
      %p621 = por %p619, %p620
      %p622 = scmp.ne.s32.totalorder %s610, %s611
      %p623 = scmp.eq.s32.totalorder %s46, 3
      %p624 = por %p622, %p623
      %p626 = scmp.ne.s32.totalorder %s611, %s625
      %p627 = scmp.eq.s32.totalorder %s46, 0
      %p628 = por %p626, %p627
      %s630 = sadd.s32 %s629, 1
      %p633 = scmp.eq.s32.totalorder %s40, 3
      %p634 = scmp.ne.s32.totalorder %s629, %s631
      %p635 = scmp.eq.s32.totalorder %s40, 0
      %p636 = por %p634, %p635
      %p637 = scmp.ne.s32.totalorder %s629, %s631
      %p638 = scmp.eq.s32.totalorder %s45, 3
      %p639 = por %p637, %p638
      %p640 = scmp.ne.s32.totalorder %s631, %s632
      %p641 = scmp.eq.s32.totalorder %s45, 0
      %p642 = por %p640, %p641
      %p643 = scmp.ne.s32.totalorder %s631, %s632
      %p644 = scmp.eq.s32.totalorder %s46, 3
      %p645 = por %p643, %p644
      %p647 = scmp.ne.s32.totalorder %s632, %s646
      %p648 = scmp.eq.s32.totalorder %s46, 0
      %p649 = por %p647, %p648
      %s650 = ssub.s32 %s48, %s55
      %p651 = scmp.eq.s32.totalorder %s650, 0
      %s653 = sadd.s32 %s652, 1
      %s654 = scalar_select %p651, %s652, %s653
      %p657 = pneg %p651
      %p658 = scmp.eq.s32.totalorder %s40, 3
      %p659 = por %p657, %p658
      %p660 = scmp.ne.s32.totalorder %s652, %s655
      %p661 = scmp.eq.s32.totalorder %s40, 0
      %p662 = por %p660, %p661
      %p663 = scmp.ne.s32.totalorder %s652, %s655
      %p664 = scmp.eq.s32.totalorder %s45, 3
      %p665 = por %p663, %p664
      %p666 = scmp.ne.s32.totalorder %s655, %s656
      %p667 = scmp.eq.s32.totalorder %s45, 0
      %p668 = por %p666, %p667
      %p669 = scmp.ne.s32.totalorder %s655, %s656
      %p670 = scmp.eq.s32.totalorder %s46, 3
      %p671 = por %p669, %p670
      %p673 = scmp.ne.s32.totalorder %s656, %s672
      %p674 = scmp.eq.s32.totalorder %s46, 0
      %p675 = por %p673, %p674
      %p676 = scmp.le.s32.totalorder 1, %s40
      %p677 = scmp.lt.s32.totalorder %s40, 5
      %p678 = pnand %p676, %p677
      %p679 = pneg %p678
      // Predicated region
      $region9: #{tpu_custom_call.1} parent=5 // pred_check
        _
      $region10: #{tpu_custom_call.1} parent=5 // pred_check_branch
        %681 = sbr.rel (%p678) target = $region12
      $region11: #{tpu_custom_call.1} parent=5 // pred_region
        %s682 = ssub.s32 %s40, 1
        // Predicated region
        $region13: #{tpu_custom_call.1} parent=11 // pred_check
          %p683 = pneg %p99
        $region14: #{tpu_custom_call.1} parent=11 // pred_check_branch
          %685 = sbr.rel (%p683) target = $region16
        $region15: #{tpu_custom_call.1} parent=11 // pred_region
          %687 = vsyncadd [#allocation7], 0
          %s689 = sshll.u32 %s1, 4
          %s690 = int_to_ptr.hbm [resolvable:$true] %s689
          %s691 = sshll.u32 [#allocation6], 4
          %s692 = int_to_ptr.vmem [resolvable:$true] %s691
          %694 = dma.hbm_to_vmem [thread:$0]  %s690, 64, %s692, [#allocation7]
        $region16: #{tpu_custom_call.1} parent=11 // pred_fallthru
          _
        // Predicated region
        $region17: #{tpu_custom_call.1} parent=11 // pred_check
          %p695 = pneg %p120
        $region18: #{tpu_custom_call.1} parent=11 // pred_check_branch
          %697 = sbr.rel (%p695) target = $region20
        $region19: #{tpu_custom_call.1} parent=11 // pred_region
          _
        $region20: #{tpu_custom_call.1} parent=11 // pred_fallthru
          _
        // Predicated region
        $region21: #{tpu_custom_call.1} parent=11 // pred_check
          %p698 = pneg %p141
        $region22: #{tpu_custom_call.1} parent=11 // pred_check_branch
          %700 = sbr.rel (%p698) target = $region24
        $region23: #{tpu_custom_call.1} parent=11 // pred_region
          %702 = vsyncadd [#allocation7], 0
          %s704 = sshll.u32 %s3, 4
          %s705 = int_to_ptr.hbm [resolvable:$true] %s704
          %s706 = sshll.u32 [#allocation8], 4
          %s707 = int_to_ptr.vmem [resolvable:$true] %s706
          %709 = dma.hbm_to_vmem [thread:$0]  %s705, 128, %s707, [#allocation7]
        $region24: #{tpu_custom_call.1} parent=11 // pred_fallthru
          _
        // Predicated region
        $region25: #{tpu_custom_call.1} parent=11 // pred_check
          %p710 = pneg %p162
        $region26: #{tpu_custom_call.1} parent=11 // pred_check_branch
          %712 = sbr.rel (%p710) target = $region28
        $region27: #{tpu_custom_call.1} parent=11 // pred_region
          %714 = vsyncadd [#allocation10], 0
          %s716 = sshll.u32 %s4, 4
          %s717 = int_to_ptr.hbm [resolvable:$true] %s716
          %s718 = sshll.u32 [#allocation9], 4
          %s719 = int_to_ptr.vmem [resolvable:$true] %s718
          %721 = dma.hbm_to_vmem [thread:$0]  %s717, 128, %s719, [#allocation10]
        $region28: #{tpu_custom_call.1} parent=11 // pred_fallthru
          _
        // Predicated region
        $region29: #{tpu_custom_call.1} parent=11 // pred_check
          %p722 = pneg %p495
        $region30: #{tpu_custom_call.1} parent=11 // pred_check_branch
          %724 = sbr.rel (%p722) target = $region32
        $region31: #{tpu_custom_call.1} parent=11 // pred_region
          %726 = vsyncadd [#allocation7], 0
          %s728 = sshll.u32 %s17, 4
          %s729 = int_to_ptr.hbm [resolvable:$true] %s728
          %s730 = sshll.u32 [#allocation19], 4
          %s731 = int_to_ptr.vmem [resolvable:$true] %s730
          %733 = dma.hbm_to_vmem [thread:$0]  %s729, 16, %s731, [#allocation7]
        $region32: #{tpu_custom_call.1} parent=11 // pred_fallthru
          _
        // Predicated region
        $region33: #{tpu_custom_call.1} parent=11 // pred_check
          %p734 = pneg %p516
        $region34: #{tpu_custom_call.1} parent=11 // pred_check_branch
          %736 = sbr.rel (%p734) target = $region36
        $region35: #{tpu_custom_call.1} parent=11 // pred_region
          %738 = vsyncadd [#allocation10], 0
          %s740 = sshll.u32 %s18, 4
          %s741 = int_to_ptr.hbm [resolvable:$true] %s740
          %s742 = sshll.u32 [#allocation20], 4
          %s743 = int_to_ptr.vmem [resolvable:$true] %s742
          %745 = dma.hbm_to_vmem [thread:$0]  %s741, 16, %s743, [#allocation10]
        $region36: #{tpu_custom_call.1} parent=11 // pred_fallthru
          _
        // Predicated region
        $region37: #{tpu_custom_call.1} parent=11 // pred_check
          %p746 = pneg %p537
        $region38: #{tpu_custom_call.1} parent=11 // pred_check_branch
          %748 = sbr.rel (%p746) target = $region40
        $region39: #{tpu_custom_call.1} parent=11 // pred_region
          _
        $region40: #{tpu_custom_call.1} parent=11 // pred_fallthru
          _
        // Predicated region
        $region41: #{tpu_custom_call.1} parent=11 // pred_check
          %p749 = pneg %p558
        $region42: #{tpu_custom_call.1} parent=11 // pred_check_branch
          %751 = sbr.rel (%p749) target = $region44
        $region43: #{tpu_custom_call.1} parent=11 // pred_region
          _
        $region44: #{tpu_custom_call.1} parent=11 // pred_fallthru
          _
        // Predicated region
        $region45: #{tpu_custom_call.1} parent=11 // pred_check
          %p752 = pneg %p579
        $region46: #{tpu_custom_call.1} parent=11 // pred_check_branch
          %754 = sbr.rel (%p752) target = $region48
        $region47: #{tpu_custom_call.1} parent=11 // pred_region
          %756 = vsyncadd [#allocation22], 0
          %s757 = sshll.u32 %s21, 4
          %s758 = int_to_ptr.hbm [resolvable:$true] %s757
          %s759 = sshll.u32 [#allocation21], 4
          %s760 = int_to_ptr.vmem [resolvable:$true] %s759
          %765 = dma.hbm_to_vmem [thread:$0]  %s758, 256, %s760, [#allocation22], 64, 64, 4
        $region48: #{tpu_custom_call.1} parent=11 // pred_fallthru
          _
        // Predicated region
        $region49: #{tpu_custom_call.1} parent=11 // pred_check
          %p766 = pneg %p600
        $region50: #{tpu_custom_call.1} parent=11 // pred_check_branch
          %768 = sbr.rel (%p766) target = $region52
        $region51: #{tpu_custom_call.1} parent=11 // pred_region
          _
        $region52: #{tpu_custom_call.1} parent=11 // pred_fallthru
          _
        // Predicated region
        $region53: #{tpu_custom_call.1} parent=11 // pred_check
          %p769 = pneg %p621
        $region54: #{tpu_custom_call.1} parent=11 // pred_check_branch
          %771 = sbr.rel (%p769) target = $region56
        $region55: #{tpu_custom_call.1} parent=11 // pred_region
          _
        $region56: #{tpu_custom_call.1} parent=11 // pred_fallthru
          _
        // Predicated region
        $region57: #{tpu_custom_call.1} parent=11 // pred_check
          %p772 = pneg %p642
        $region58: #{tpu_custom_call.1} parent=11 // pred_check_branch
          %774 = sbr.rel (%p772) target = $region60
        $region59: #{tpu_custom_call.1} parent=11 // pred_region
          _
        $region60: #{tpu_custom_call.1} parent=11 // pred_fallthru
          _
      $region12: #{tpu_custom_call.1} parent=5 // pred_fallthru
        _
      %p775 = scmp.lt.s32.totalorder %s40, 4
      // Predicated region
      $region61: #{tpu_custom_call.1} parent=5 // pred_check
        %p776 = pneg %p775
      $region62: #{tpu_custom_call.1} parent=5 // pred_check_branch
        %778 = sbr.rel (%p776) target = $region64
      $region63: #{tpu_custom_call.1} parent=5 // pred_region
        // Predicated region
        $region65: #{tpu_custom_call.1} parent=63 // pred_check
          %p779 = pneg %p72
        $region66: #{tpu_custom_call.1} parent=63 // pred_check_branch
          %781 = sbr.rel (%p779) target = $region68
        $region67: #{tpu_custom_call.1} parent=63 // pred_region
          %s782 = sand.u32 %s40, 1
          %s783 = scalar_lea.sflag [#allocation4], %s782
          %s784 = sand.u32 %s62, 1
          %s785 = scalar_lea.vmem [#allocation3], %s784
          %787 = vsyncadd %s783, 0
          %s788 = scalar_lea.hbm %s0, %s48
          %s790 = sshll.u32 %s788, 4
          %s791 = int_to_ptr.hbm [resolvable:$true] %s790
          %s792 = sshll.u32 %s785, 4
          %s793 = int_to_ptr.vmem [resolvable:$true] %s792
          %795 = dma.hbm_to_vmem [thread:$0]  %s791, 16, %s793, %s783
        $region68: #{tpu_custom_call.1} parent=63 // pred_fallthru
          _
        // Predicated region
        $region69: #{tpu_custom_call.1} parent=63 // pred_check
          %p796 = pneg %p182
        $region70: #{tpu_custom_call.1} parent=63 // pred_check_branch
          %798 = sbr.rel (%p796) target = $region72
        $region71: #{tpu_custom_call.1} parent=63 // pred_region
          %p799 = scmp.lt.s32.totalorder %s47, 1
          %s800 = scalar_select %p799, %s47, 1
          %s801 = smul.addr %s800, 4
          %s802 = smul.addr %s801, 4
          %s803 = scalar_lea.vmem %s5, %s802
        $region72: #{tpu_custom_call.1} parent=63 // pred_fallthru
          _
        // Predicated region
        $region73: #{tpu_custom_call.1} parent=63 // pred_check
          %p804 = pneg %p208
        $region74: #{tpu_custom_call.1} parent=63 // pred_check_branch
          %806 = sbr.rel (%p804) target = $region76
        $region75: #{tpu_custom_call.1} parent=63 // pred_region
          %s807 = sand.u32 %s40, 1
          %s808 = scalar_lea.sflag [#allocation4], %s807
          %s809 = sand.u32 %s198, 1
          %s810 = scalar_lea.vmem [#allocation11], %s809
          %812 = vsyncadd %s808, 0
          %s813 = scalar_lea.hbm %s6, %s47
          %s815 = sshll.u32 %s813, 4
          %s816 = int_to_ptr.hbm [resolvable:$true] %s815
          %s817 = sshll.u32 %s810, 4
          %s818 = int_to_ptr.vmem [resolvable:$true] %s817
          %820 = dma.hbm_to_vmem [thread:$0]  %s816, 16, %s818, %s808
        $region76: #{tpu_custom_call.1} parent=63 // pred_fallthru
          _
        // Predicated region
        $region77: #{tpu_custom_call.1} parent=63 // pred_check
          %p821 = pneg %p234
        $region78: #{tpu_custom_call.1} parent=63 // pred_check_branch
          %823 = sbr.rel (%p821) target = $region80
        $region79: #{tpu_custom_call.1} parent=63 // pred_region
          %p824 = scmp.lt.s32.totalorder %s47, 1
          %s825 = scalar_select %p824, %s47, 1
          %s826 = smul.addr %s825, 4
          %s827 = smul.addr %s826, 4
          %s828 = scalar_lea.vmem %s7, %s827
        $region80: #{tpu_custom_call.1} parent=63 // pred_fallthru
          _
        // Predicated region
        $region81: #{tpu_custom_call.1} parent=63 // pred_check
          %p829 = pneg %p260
        $region82: #{tpu_custom_call.1} parent=63 // pred_check_branch
          %831 = sbr.rel (%p829) target = $region84
        $region83: #{tpu_custom_call.1} parent=63 // pred_region
          %s832 = sand.u32 %s40, 1
          %s833 = scalar_lea.sflag [#allocation4], %s832
          %s834 = sand.u32 %s250, 1
          %s835 = scalar_lea.vmem [#allocation12], %s834
          %837 = vsyncadd %s833, 0
          %s838 = scalar_lea.hbm %s8, %s47
          %s840 = sshll.u32 %s838, 4
          %s841 = int_to_ptr.hbm [resolvable:$true] %s840
          %s842 = sshll.u32 %s835, 4
          %s843 = int_to_ptr.vmem [resolvable:$true] %s842
          %845 = dma.hbm_to_vmem [thread:$0]  %s841, 16, %s843, %s833
        $region84: #{tpu_custom_call.1} parent=63 // pred_fallthru
          _
        // Predicated region
        $region85: #{tpu_custom_call.1} parent=63 // pred_check
          %p846 = pneg %p286
        $region86: #{tpu_custom_call.1} parent=63 // pred_check_branch
          %848 = sbr.rel (%p846) target = $region88
        $region87: #{tpu_custom_call.1} parent=63 // pred_region
          %s849 = sand.u32 %s40, 1
          %s850 = scalar_lea.sflag [#allocation4], %s849
          %s851 = sand.u32 %s276, 1
          %s852 = scalar_lea.vmem [#allocation13], %s851
          %854 = vsyncadd %s850, 0
          %s855 = scalar_lea.hbm %s9, %s47
          %s857 = sshll.u32 %s855, 4
          %s858 = int_to_ptr.hbm [resolvable:$true] %s857
          %s859 = sshll.u32 %s852, 4
          %s860 = int_to_ptr.vmem [resolvable:$true] %s859
          %862 = dma.hbm_to_vmem [thread:$0]  %s858, 16, %s860, %s850
        $region88: #{tpu_custom_call.1} parent=63 // pred_fallthru
          _
        // Predicated region
        $region89: #{tpu_custom_call.1} parent=63 // pred_check
          %p863 = pneg %p312
        $region90: #{tpu_custom_call.1} parent=63 // pred_check_branch
          %865 = sbr.rel (%p863) target = $region92
        $region91: #{tpu_custom_call.1} parent=63 // pred_region
          %s866 = sand.u32 %s40, 1
          %s867 = scalar_lea.sflag [#allocation4], %s866
          %s868 = sand.u32 %s302, 1
          %s869 = scalar_lea.vmem [#allocation14], %s868
          %871 = vsyncadd %s867, 0
          %s872 = scalar_lea.hbm %s10, %s47
          %s874 = sshll.u32 %s872, 4
          %s875 = int_to_ptr.hbm [resolvable:$true] %s874
          %s876 = sshll.u32 %s869, 4
          %s877 = int_to_ptr.vmem [resolvable:$true] %s876
          %879 = dma.hbm_to_vmem [thread:$0]  %s875, 16, %s877, %s867
        $region92: #{tpu_custom_call.1} parent=63 // pred_fallthru
          _
        // Predicated region
        $region93: #{tpu_custom_call.1} parent=63 // pred_check
          %p880 = pneg %p338
        $region94: #{tpu_custom_call.1} parent=63 // pred_check_branch
          %882 = sbr.rel (%p880) target = $region96
        $region95: #{tpu_custom_call.1} parent=63 // pred_region
          %p883 = scmp.lt.s32.totalorder %s47, 1
          %s884 = scalar_select %p883, %s47, 1
          %s885 = smul.addr %s884, 4
          %s886 = smul.addr %s885, 4
          %s887 = scalar_lea.vmem %s11, %s886
        $region96: #{tpu_custom_call.1} parent=63 // pred_fallthru
          _
        // Predicated region
        $region97: #{tpu_custom_call.1} parent=63 // pred_check
          %p888 = pneg %p364
        $region98: #{tpu_custom_call.1} parent=63 // pred_check_branch
          %890 = sbr.rel (%p888) target = $region100
        $region99: #{tpu_custom_call.1} parent=63 // pred_region
          %s891 = sand.u32 %s40, 1
          %s892 = scalar_lea.sflag [#allocation4], %s891
          %s893 = sand.u32 %s354, 1
          %s894 = scalar_lea.vmem [#allocation15], %s893
          %896 = vsyncadd %s892, 0
          %s897 = scalar_lea.hbm %s12, %s47
          %s899 = sshll.u32 %s897, 4
          %s900 = int_to_ptr.hbm [resolvable:$true] %s899
          %s901 = sshll.u32 %s894, 4
          %s902 = int_to_ptr.vmem [resolvable:$true] %s901
          %904 = dma.hbm_to_vmem [thread:$0]  %s900, 16, %s902, %s892
        $region100: #{tpu_custom_call.1} parent=63 // pred_fallthru
          _
        // Predicated region
        $region101: #{tpu_custom_call.1} parent=63 // pred_check
          %p905 = pneg %p390
        $region102: #{tpu_custom_call.1} parent=63 // pred_check_branch
          %907 = sbr.rel (%p905) target = $region104
        $region103: #{tpu_custom_call.1} parent=63 // pred_region
          %p908 = scmp.lt.s32.totalorder %s47, 1
          %s909 = scalar_select %p908, %s47, 1
          %s910 = smul.addr %s909, 16
          %s911 = smul.addr %s910, 4
          %s912 = scalar_lea.vmem %s13, %s911
        $region104: #{tpu_custom_call.1} parent=63 // pred_fallthru
          _
        // Predicated region
        $region105: #{tpu_custom_call.1} parent=63 // pred_check
          %p913 = pneg %p416
        $region106: #{tpu_custom_call.1} parent=63 // pred_check_branch
          %915 = sbr.rel (%p913) target = $region108
        $region107: #{tpu_custom_call.1} parent=63 // pred_region
          %s916 = sand.u32 %s40, 1
          %s917 = scalar_lea.sflag [#allocation4], %s916
          %s918 = sand.u32 %s406, 1
          %s919 = scalar_lea.vmem [#allocation16], %s918
          %921 = vsyncadd %s917, 0
          %s922 = scalar_lea.hbm %s14, %s47
          %s924 = sshll.u32 %s922, 4
          %s925 = int_to_ptr.hbm [resolvable:$true] %s924
          %s926 = sshll.u32 %s919, 4
          %s927 = int_to_ptr.vmem [resolvable:$true] %s926
          %929 = dma.hbm_to_vmem [thread:$0]  %s925, 16, %s927, %s917
        $region108: #{tpu_custom_call.1} parent=63 // pred_fallthru
          _
        // Predicated region
        $region109: #{tpu_custom_call.1} parent=63 // pred_check
          %p930 = pneg %p442
        $region110: #{tpu_custom_call.1} parent=63 // pred_check_branch
          %932 = sbr.rel (%p930) target = $region112
        $region111: #{tpu_custom_call.1} parent=63 // pred_region
          %s933 = sand.u32 %s40, 1
          %s934 = scalar_lea.sflag [#allocation4], %s933
          %s935 = sand.u32 %s432, 1
          %s936 = scalar_lea.vmem [#allocation17], %s935
          %938 = vsyncadd %s934, 0
          %s939 = scalar_lea.hbm %s15, %s47
          %s941 = sshll.u32 %s939, 4
          %s942 = int_to_ptr.hbm [resolvable:$true] %s941
          %s943 = sshll.u32 %s936, 4
          %s944 = int_to_ptr.vmem [resolvable:$true] %s943
          %946 = dma.hbm_to_vmem [thread:$0]  %s942, 16, %s944, %s934
        $region112: #{tpu_custom_call.1} parent=63 // pred_fallthru
          _
        // Predicated region
        $region113: #{tpu_custom_call.1} parent=63 // pred_check
          %p947 = pneg %p468
        $region114: #{tpu_custom_call.1} parent=63 // pred_check_branch
          %949 = sbr.rel (%p947) target = $region116
        $region115: #{tpu_custom_call.1} parent=63 // pred_region
          %s950 = sand.u32 %s40, 1
          %s951 = scalar_lea.sflag [#allocation4], %s950
          %s952 = sand.u32 %s458, 1
          %s953 = scalar_lea.vmem [#allocation18], %s952
          %955 = vsyncadd %s951, 0
          %s956 = scalar_lea.hbm %s16, %s47
          %s958 = sshll.u32 %s956, 4
          %s959 = int_to_ptr.hbm [resolvable:$true] %s958
          %s960 = sshll.u32 %s953, 4
          %s961 = int_to_ptr.vmem [resolvable:$true] %s960
          %963 = dma.hbm_to_vmem [thread:$0]  %s959, 16, %s961, %s951
        $region116: #{tpu_custom_call.1} parent=63 // pred_fallthru
          _
      $region64: #{tpu_custom_call.1} parent=5 // pred_fallthru
        _
      %p964 = scmp.le.s32.totalorder 1, %s40
      %p965 = scmp.lt.s32.totalorder %s40, 5
      %p966 = pnand %p964, %p965
      %p967 = pneg %p966
      // Predicated region
      $region117: #{tpu_custom_call.1} parent=5 // pred_check
        _
      $region118: #{tpu_custom_call.1} parent=5 // pred_check_branch
        %969 = sbr.rel (%p966) target = $region120
      $region119: #{tpu_custom_call.1} parent=5 // pred_region
        %s970 = ssub.s32 %s40, 1
        %s971 = sand.u32 %s45, 1
        %s972 = scalar_lea.sflag [#allocation4], %s971
        %s973 = sand.u32 %s65, 1
        %s974 = scalar_lea.vmem [#allocation3], %s973
        // Predicated region
        $region121: #{tpu_custom_call.1} parent=119 // pred_check
          %p975 = pneg %p78
        $region122: #{tpu_custom_call.1} parent=119 // pred_check_branch
          %977 = sbr.rel (%p975) target = $region124
        $region123: #{tpu_custom_call.1} parent=119 // pred_region
          %979 = dma.done %s972, 16
        $region124: #{tpu_custom_call.1} parent=119 // pred_fallthru
          _
        // Predicated region
        $region125: #{tpu_custom_call.1} parent=119 // pred_check
          %p980 = pneg %p99
        $region126: #{tpu_custom_call.1} parent=119 // pred_check_branch
          %982 = sbr.rel (%p980) target = $region128
        $region127: #{tpu_custom_call.1} parent=119 // pred_region
          %984 = dma.done [#allocation7], 64
        $region128: #{tpu_custom_call.1} parent=119 // pred_fallthru
          _
        // Predicated region
        $region129: #{tpu_custom_call.1} parent=119 // pred_check
          %p985 = pneg %p141
        $region130: #{tpu_custom_call.1} parent=119 // pred_check_branch
          %987 = sbr.rel (%p985) target = $region132
        $region131: #{tpu_custom_call.1} parent=119 // pred_region
          %989 = dma.done [#allocation7], 128
        $region132: #{tpu_custom_call.1} parent=119 // pred_fallthru
          _
        // Predicated region
        $region133: #{tpu_custom_call.1} parent=119 // pred_check
          %p990 = pneg %p162
        $region134: #{tpu_custom_call.1} parent=119 // pred_check_branch
          %992 = sbr.rel (%p990) target = $region136
        $region135: #{tpu_custom_call.1} parent=119 // pred_region
          %994 = dma.done [#allocation10], 128
        $region136: #{tpu_custom_call.1} parent=119 // pred_fallthru
          _
        %s995 = sand.u32 %s45, 1
        %s996 = scalar_lea.sflag [#allocation4], %s995
        %s997 = sand.u32 %s201, 1
        %s998 = scalar_lea.vmem [#allocation11], %s997
        // Predicated region
        $region137: #{tpu_custom_call.1} parent=119 // pred_check
          %p999 = pneg %p214
        $region138: #{tpu_custom_call.1} parent=119 // pred_check_branch
          %1001 = sbr.rel (%p999) target = $region140
        $region139: #{tpu_custom_call.1} parent=119 // pred_region
          %1003 = dma.done %s996, 16
        $region140: #{tpu_custom_call.1} parent=119 // pred_fallthru
          _
        %s1004 = sand.u32 %s45, 1
        %s1005 = scalar_lea.sflag [#allocation4], %s1004
        %s1006 = sand.u32 %s253, 1
        %s1007 = scalar_lea.vmem [#allocation12], %s1006
        // Predicated region
        $region141: #{tpu_custom_call.1} parent=119 // pred_check
          %p1008 = pneg %p266
        $region142: #{tpu_custom_call.1} parent=119 // pred_check_branch
          %1010 = sbr.rel (%p1008) target = $region144
        $region143: #{tpu_custom_call.1} parent=119 // pred_region
          %1012 = dma.done %s1005, 16
        $region144: #{tpu_custom_call.1} parent=119 // pred_fallthru
          _
        %s1013 = sand.u32 %s45, 1
        %s1014 = scalar_lea.sflag [#allocation4], %s1013
        %s1015 = sand.u32 %s279, 1
        %s1016 = scalar_lea.vmem [#allocation13], %s1015
        // Predicated region
        $region145: #{tpu_custom_call.1} parent=119 // pred_check
          %p1017 = pneg %p292
        $region146: #{tpu_custom_call.1} parent=119 // pred_check_branch
          %1019 = sbr.rel (%p1017) target = $region148
        $region147: #{tpu_custom_call.1} parent=119 // pred_region
          %1021 = dma.done %s1014, 16
        $region148: #{tpu_custom_call.1} parent=119 // pred_fallthru
          _
        %s1022 = sand.u32 %s45, 1
        %s1023 = scalar_lea.sflag [#allocation4], %s1022
        %s1024 = sand.u32 %s305, 1
        %s1025 = scalar_lea.vmem [#allocation14], %s1024
        // Predicated region
        $region149: #{tpu_custom_call.1} parent=119 // pred_check
          %p1026 = pneg %p318
        $region150: #{tpu_custom_call.1} parent=119 // pred_check_branch
          %1028 = sbr.rel (%p1026) target = $region152
        $region151: #{tpu_custom_call.1} parent=119 // pred_region
          %1030 = dma.done %s1023, 16
        $region152: #{tpu_custom_call.1} parent=119 // pred_fallthru
          _
        %s1031 = sand.u32 %s45, 1
        %s1032 = scalar_lea.sflag [#allocation4], %s1031
        %s1033 = sand.u32 %s357, 1
        %s1034 = scalar_lea.vmem [#allocation15], %s1033
        // Predicated region
        $region153: #{tpu_custom_call.1} parent=119 // pred_check
          %p1035 = pneg %p370
        $region154: #{tpu_custom_call.1} parent=119 // pred_check_branch
          %1037 = sbr.rel (%p1035) target = $region156
        $region155: #{tpu_custom_call.1} parent=119 // pred_region
          %1039 = dma.done %s1032, 16
        $region156: #{tpu_custom_call.1} parent=119 // pred_fallthru
          _
        %s1040 = sand.u32 %s45, 1
        %s1041 = scalar_lea.sflag [#allocation4], %s1040
        %s1042 = sand.u32 %s409, 1
        %s1043 = scalar_lea.vmem [#allocation16], %s1042
        // Predicated region
        $region157: #{tpu_custom_call.1} parent=119 // pred_check
          %p1044 = pneg %p422
        $region158: #{tpu_custom_call.1} parent=119 // pred_check_branch
          %1046 = sbr.rel (%p1044) target = $region160
        $region159: #{tpu_custom_call.1} parent=119 // pred_region
          %1048 = dma.done %s1041, 16
        $region160: #{tpu_custom_call.1} parent=119 // pred_fallthru
          _
        %s1049 = sand.u32 %s45, 1
        %s1050 = scalar_lea.sflag [#allocation4], %s1049
        %s1051 = sand.u32 %s435, 1
        %s1052 = scalar_lea.vmem [#allocation17], %s1051
        // Predicated region
        $region161: #{tpu_custom_call.1} parent=119 // pred_check
          %p1053 = pneg %p448
        $region162: #{tpu_custom_call.1} parent=119 // pred_check_branch
          %1055 = sbr.rel (%p1053) target = $region164
        $region163: #{tpu_custom_call.1} parent=119 // pred_region
          %1057 = dma.done %s1050, 16
        $region164: #{tpu_custom_call.1} parent=119 // pred_fallthru
          _
        %s1058 = sand.u32 %s45, 1
        %s1059 = scalar_lea.sflag [#allocation4], %s1058
        %s1060 = sand.u32 %s461, 1
        %s1061 = scalar_lea.vmem [#allocation18], %s1060
        // Predicated region
        $region165: #{tpu_custom_call.1} parent=119 // pred_check
          %p1062 = pneg %p474
        $region166: #{tpu_custom_call.1} parent=119 // pred_check_branch
          %1064 = sbr.rel (%p1062) target = $region168
        $region167: #{tpu_custom_call.1} parent=119 // pred_region
          %1066 = dma.done %s1059, 16
        $region168: #{tpu_custom_call.1} parent=119 // pred_fallthru
          _
        // Predicated region
        $region169: #{tpu_custom_call.1} parent=119 // pred_check
          %p1067 = pneg %p495
        $region170: #{tpu_custom_call.1} parent=119 // pred_check_branch
          %1069 = sbr.rel (%p1067) target = $region172
        $region171: #{tpu_custom_call.1} parent=119 // pred_region
          %1071 = dma.done [#allocation7], 16
        $region172: #{tpu_custom_call.1} parent=119 // pred_fallthru
          _
        // Predicated region
        $region173: #{tpu_custom_call.1} parent=119 // pred_check
          %p1072 = pneg %p516
        $region174: #{tpu_custom_call.1} parent=119 // pred_check_branch
          %1074 = sbr.rel (%p1072) target = $region176
        $region175: #{tpu_custom_call.1} parent=119 // pred_region
          %1076 = dma.done [#allocation10], 16
        $region176: #{tpu_custom_call.1} parent=119 // pred_fallthru
          _
        // Predicated region
        $region177: #{tpu_custom_call.1} parent=119 // pred_check
          %p1077 = pneg %p579
        $region178: #{tpu_custom_call.1} parent=119 // pred_check_branch
          %1079 = sbr.rel (%p1077) target = $region180
        $region179: #{tpu_custom_call.1} parent=119 // pred_region
          %1081 = dma.done [#allocation22], 256
        $region180: #{tpu_custom_call.1} parent=119 // pred_fallthru
          _
        %s1082 = sand.u32 %s45, 1
        %s1083 = scalar_lea.sflag [#allocation4], %s1082
        %s1084 = sand.u32 %s65, 1
        %s1085 = scalar_lea.vmem [#allocation3], %s1084
        %p1086 = pneg %p78
        %p1087 = pneg %p75
        %p1088 = pneg %p99
        %p1089 = pneg %p96
        %p1090 = pneg %p120
        %p1091 = pneg %p117
        %p1092 = pneg %p141
        %p1093 = pneg %p138
        %p1094 = pneg %p162
        %p1095 = pneg %p159
        %p1096 = scmp.lt.s32.totalorder %s49, 1
        %s1097 = scalar_select %p1096, %s49, 1
        %s1098 = smul.addr %s1097, 4
        %s1099 = smul.addr %s1098, 4
        %s1100 = scalar_lea.vmem %s5, %s1099
        %p1101 = pneg %p188
        %p1102 = pneg %p185
        %s1103 = sand.u32 %s45, 1
        %s1104 = scalar_lea.sflag [#allocation4], %s1103
        %s1105 = sand.u32 %s201, 1
        %s1106 = scalar_lea.vmem [#allocation11], %s1105
        %p1107 = pneg %p214
        %p1108 = pneg %p211
        %p1109 = scmp.lt.s32.totalorder %s49, 1
        %s1110 = scalar_select %p1109, %s49, 1
        %s1111 = smul.addr %s1110, 4
        %s1112 = smul.addr %s1111, 4
        %s1113 = scalar_lea.vmem %s7, %s1112
        %p1114 = pneg %p240
        %p1115 = pneg %p237
        %s1116 = sand.u32 %s45, 1
        %s1117 = scalar_lea.sflag [#allocation4], %s1116
        %s1118 = sand.u32 %s253, 1
        %s1119 = scalar_lea.vmem [#allocation12], %s1118
        %p1120 = pneg %p266
        %p1121 = pneg %p263
        %s1122 = sand.u32 %s45, 1
        %s1123 = scalar_lea.sflag [#allocation4], %s1122
        %s1124 = sand.u32 %s279, 1
        %s1125 = scalar_lea.vmem [#allocation13], %s1124
        %p1126 = pneg %p292
        %p1127 = pneg %p289
        %s1128 = sand.u32 %s45, 1
        %s1129 = scalar_lea.sflag [#allocation4], %s1128
        %s1130 = sand.u32 %s305, 1
        %s1131 = scalar_lea.vmem [#allocation14], %s1130
        %p1132 = pneg %p318
        %p1133 = pneg %p315
        %p1134 = scmp.lt.s32.totalorder %s49, 1
        %s1135 = scalar_select %p1134, %s49, 1
        %s1136 = smul.addr %s1135, 4
        %s1137 = smul.addr %s1136, 4
        %s1138 = scalar_lea.vmem %s11, %s1137
        %p1139 = pneg %p344
        %p1140 = pneg %p341
        %s1141 = sand.u32 %s45, 1
        %s1142 = scalar_lea.sflag [#allocation4], %s1141
        %s1143 = sand.u32 %s357, 1
        %s1144 = scalar_lea.vmem [#allocation15], %s1143
        %p1145 = pneg %p370
        %p1146 = pneg %p367
        %p1147 = scmp.lt.s32.totalorder %s49, 1
        %s1148 = scalar_select %p1147, %s49, 1
        %s1149 = smul.addr %s1148, 16
        %s1150 = smul.addr %s1149, 4
        %s1151 = scalar_lea.vmem %s13, %s1150
        %p1152 = pneg %p396
        %p1153 = pneg %p393
        %s1154 = sand.u32 %s45, 1
        %s1155 = scalar_lea.sflag [#allocation4], %s1154
        %s1156 = sand.u32 %s409, 1
        %s1157 = scalar_lea.vmem [#allocation16], %s1156
        %p1158 = pneg %p422
        %p1159 = pneg %p419
        %s1160 = sand.u32 %s45, 1
        %s1161 = scalar_lea.sflag [#allocation4], %s1160
        %s1162 = sand.u32 %s435, 1
        %s1163 = scalar_lea.vmem [#allocation17], %s1162
        %p1164 = pneg %p448
        %p1165 = pneg %p445
        %s1166 = sand.u32 %s45, 1
        %s1167 = scalar_lea.sflag [#allocation4], %s1166
        %s1168 = sand.u32 %s461, 1
        %s1169 = scalar_lea.vmem [#allocation18], %s1168
        %p1170 = pneg %p474
        %p1171 = pneg %p471
        %p1172 = pneg %p495
        %p1173 = pneg %p492
        %p1174 = pneg %p516
        %p1175 = pneg %p513
        %p1176 = pneg %p537
        %p1177 = pneg %p534
        %p1178 = pneg %p558
        %p1179 = pneg %p555
        %p1180 = pneg %p579
        %p1181 = pneg %p576
        %p1182 = pneg %p600
        %p1183 = pneg %p597
        %p1184 = pneg %p621
        %p1185 = pneg %p618
        %p1186 = pneg %p642
        %p1187 = pneg %p639
        %p1188 = pneg %p668
        %p1189 = pneg %p665
        %s1190 = sand.u32 %s655, 1
        %s1191 = scalar_lea.sflag [#allocation5], %s1190
        %s1192 = sand.u32 %s655, 1
        %s1193 = smul.addr %s1192, 8
        %s1194 = scalar_lea.vmem [#allocation23], %s1193
        %p1195 = scmp.lt.s32.totalorder %s49, 1
        %s1196 = scalar_select %p1195, %s49, 1
        %s1197 = smul.addr %s1196, 4
        %s1198 = smul.addr %s1197, 4
        %s1199 = scalar_lea.vmem %s5, %s1198
        %p1200 = scmp.lt.s32.totalorder %s49, 1
        %s1201 = scalar_select %p1200, %s49, 1
        %s1202 = smul.addr %s1201, 4
        %s1203 = smul.addr %s1202, 4
        %s1204 = scalar_lea.vmem %s7, %s1203
        %p1205 = scmp.lt.s32.totalorder %s49, 1
        %s1206 = scalar_select %p1205, %s49, 1
        %s1207 = smul.addr %s1206, 4
        %s1208 = smul.addr %s1207, 4
        %s1209 = scalar_lea.vmem %s11, %s1208
        %p1210 = scmp.lt.s32.totalorder %s49, 1
        %s1211 = scalar_select %p1210, %s49, 1
        %s1212 = smul.addr %s1211, 16
        %s1213 = smul.addr %s1212, 4
        %s1214 = scalar_lea.vmem %s13, %s1213
        %p1216 = scmp.eq.s32.totalorder %s49, 0
        // Predicated region
        $region181: #{tpu_custom_call.1} parent=119 // pred_check
          %p1217 = pneg %p1216
        $region182: #{tpu_custom_call.1} parent=119 // pred_check_branch
          %1219 = sbr.rel (%p1217) target = $region184
        $region183: #{tpu_custom_call.1} parent=119 // pred_region
          %v1220 = vld [vmem:[%s974] sm:$0x1]
          %v1221 = vpack.c.bf16 %v1220, %v1220
          %v1222 = vld [vmem:[#allocation6] sm:$0xf]
          %v1223 = vld [vmem:[%s2] sm:$0x1]
          %vm1224 = vcmask 64512
          %v1226 = vsel %vm1224, %v1221, 0
          %vm1228 = vcmask 1043456
          %v1230 = vsel %vm1228, %v1222, 0
          %1232 = vmatpush.bf16.msra.mxu0 0
          %1233 = vmatpush.bf16.msra.mxu0 0
          %1234 = vmatpush.bf16.msra.mxu0 0
          %1235 = vmatpush.bf16.msra.mxu0 0
          %1236 = vmatpush.bf16.msra.mxu0 0
          %1237 = vmatpush.bf16.msra.mxu0 0
          %1238 = vmatpush.bf16.msra.mxu0 0
          %1239 = vmatpush.bf16.msra.mxu0 %v1230
          %1240 = vmatmul.bf16.gmra.mxu0 %v1226
          %v1241 = vpop.f32.mrf.mxu0
          %v1242 = vadd.f32 %v1223, %v1241
          %v1243 = vpop.f32.mrf.mxu0
          %1244 = vdwg.mxu0
          %1246 = vrot.lane.b32.xlu0 %v1242, 112
          %v1247 = vpop.permute.xlu0 %1246
          %1249 = vrot.lane.b32.xlu0 %v1242, 16
          %v1250 = vpop.permute.xlu0 %1249
          %vm1252 = vcmask 130048
          %v1253 = vsel %vm1252, %v1247, %v1250
          %v1254 = vld [vmem:[#allocation8] sm:$0xff]
          %v1255 = vperm.slane %v1242, 0
          %v1256 = vmul.f32 %v1255, %v1254
          %v1257 = vld [vmem:[#allocation9] sm:$0xff]
          %v1258 = vperm.slane %v1253, 0
          %v1259 = vmul.f32 %v1258, %v1257
          %v1260 = vadd.f32 %v1256, %v1259
          %s1261 = smul.u32 %s50, 8
          %s1262 = scalar_lea.vmem [#allocation2], %s1261
          %vm1263 = vcmask 261120
          %1264 = vst.msk [vmem:[%s1262] sm:$0xff] %vm1263, %v1260
        $region184: #{tpu_custom_call.1} parent=119 // pred_fallthru
          _
        %s1265 = smul.u32 %s50, 8
        %s1266 = scalar_lea.vmem [#allocation2], %s1265
        %v1267 = vld [vmem:[%s1266] sm:$0xff]
        %v1268 = vpack.c.bf16 %v1267, %v1267
        %v1269 = vld [vmem:[%s1199] sm:$0xf]
        %v1270 = vld [vmem:[%s1199 + $0x4] sm:$0xf]
        %v1271 = vld [vmem:[%s1199 + $0x8] sm:$0xf]
        %v1272 = vld [vmem:[%s1199 + $0xc] sm:$0xf]
        %v1273 = vld [vmem:[%s998] sm:$0x1]
        %v1275 = vperm.slane %v1273, 0
        %v1281 = vunpack.c.l.b16 %v1269
        %v1282 = vunpack.c.l.b16 %v1270
        %v1283 = vunpack.c.l.b16 %v1271
        %v1284 = vunpack.c.l.b16 %v1272
        %v1285 = vpack.c.b16 %v1282, %v1281
        %v1286 = vpack.c.b16 %v1284, %v1283
        %vm1289 = vcmask 261120
        %v1291 = vsel %vm1289, %v1268, 0
        %1293 = vmatpush.bf16.msra.mxu0 0
        %1294 = vmatpush.bf16.msra.mxu0 0
        %1295 = vmatpush.bf16.msra.mxu0 0
        %1296 = vmatpush.bf16.msra.mxu0 0
        %1297 = vmatpush.bf16.msra.mxu0 0
        %1298 = vmatpush.bf16.msra.mxu0 0
        %1299 = vmatpush.bf16.msra.mxu0 %v1286
        %1300 = vmatpush.bf16.msra.mxu0 %v1285
        %1301 = vmatmul.bf16.gmra.mxu0 %v1291
        %v1302 = vpop.f32.mrf.mxu0
        %v1303 = vadd.f32 %v1275, %v1302
        %v1304 = vpop.f32.mrf.mxu0
        %1305 = vdwg.mxu0
        %v1306 = vlaneseq
        %v1307 = vshrl.u32 %v1306, 7
        %v1308 = vlaneseq
        %v1309 = vand.u32 %v1308, 127
        %vm1310 = vcmp.le.s32.totalorder %v1309, %v1307
        %v1311 = vmul.f32 %v1303, 0.35355338
        %v1312 = vpack.c.bf16 %v1311, %v1311
        %v1313 = vpack.c.bf16 %v1303, %v1303
        %1315 = vrot.lane.b32.xlu0 %v1313, 96
        %v1316 = vpop.permute.xlu0 %1315
        %vm1317 = vcmask 64512
        %v1319 = vsel %vm1317, %v1312, 0
        %v1322 = vsel %vm1317, %v1316, 0
        %1324 = vmatpush.bf16.xpose.msra.mxu0 0
        %1325 = vmatpush.bf16.xpose.msra.mxu0 0
        %1326 = vmatpush.bf16.xpose.msra.mxu0 0
        %1327 = vmatpush.bf16.xpose.msra.mxu0 0
        %1328 = vmatpush.bf16.xpose.msra.mxu0 0
        %1329 = vmatpush.bf16.xpose.msra.mxu0 0
        %1330 = vmatpush.bf16.xpose.msra.mxu0 0
        %1331 = vmatpush.bf16.xpose.msra.mxu0 %v1322
        %1332 = vmatmul.bf16.gmra.mxu0 %v1319
        %v1333 = vpop.f32.mrf.mxu0
        %v1334 = vadd.f32 0.0, %v1333
        %v1335 = vpop.f32.mrf.mxu0
        %1336 = vdwg.mxu0
        %v1337 = vsel %vm1310, %v1334, -1e+30
        %v1338 = vsel %vm1317, %v1337, -inf
        %1339 = vmax.xlane.f32.xlu0 %v1338
        %v1340 = vpop.xlane.xlu0 %1339
        %v1341 = vsub.f32 %v1337, %v1340
        %v1342 = vmul.f32 %v1341, 1.442695
        %v1343 = vpow.pop %v1342
        %v1344 = vsel %vm1317, %v1343, 0.0
        %1345 = vadd.xlane.f32.xlu0 %v1344
        %v1346 = vpop.xlane.xlu0 %1345
        %v1347 = vrcp.pop %v1346
        %v1348 = vmul.f32 %v1343, %v1347
        %v1349 = vpack.c.bf16 %v1348, %v1348
        %1350 = vrot.lane.b32.xlu0 %v1313, 64
        %v1351 = vpop.permute.xlu0 %1350
        %v1353 = vsel %vm1317, %v1349, 0
        %vm1355 = vcmask 1043456
        %v1357 = vsel %vm1355, %v1351, 0
        %1359 = vmatpush.bf16.msra.mxu0 0
        %1360 = vmatpush.bf16.msra.mxu0 0
        %1361 = vmatpush.bf16.msra.mxu0 0
        %1362 = vmatpush.bf16.msra.mxu0 0
        %1363 = vmatpush.bf16.msra.mxu0 0
        %1364 = vmatpush.bf16.msra.mxu0 0
        %1365 = vmatpush.bf16.msra.mxu0 0
        %1366 = vmatpush.bf16.msra.mxu0 %v1357
        %1367 = vmatmul.bf16.gmra.mxu0 %v1353
        %v1368 = vpop.f32.mrf.mxu0
        %v1369 = vadd.f32 0.0, %v1368
        %v1370 = vpop.f32.mrf.mxu0
        %1371 = vdwg.mxu0
        %1373 = vrot.lane.b32.xlu0 %v1312, 120
        %v1374 = vpop.permute.xlu0 %1373
        %1375 = vrot.lane.b32.xlu0 %v1313, 88
        %v1376 = vpop.permute.xlu0 %1375
        %v1378 = vsel %vm1317, %v1374, 0
        %v1381 = vsel %vm1317, %v1376, 0
        %1383 = vmatpush.bf16.xpose.msra.mxu0 0
        %1384 = vmatpush.bf16.xpose.msra.mxu0 0
        %1385 = vmatpush.bf16.xpose.msra.mxu0 0
        %1386 = vmatpush.bf16.xpose.msra.mxu0 0
        %1387 = vmatpush.bf16.xpose.msra.mxu0 0
        %1388 = vmatpush.bf16.xpose.msra.mxu0 0
        %1389 = vmatpush.bf16.xpose.msra.mxu0 0
        %1390 = vmatpush.bf16.xpose.msra.mxu0 %v1381
        %1391 = vmatmul.bf16.gmra.mxu0 %v1378
        %v1392 = vpop.f32.mrf.mxu0
        %v1393 = vadd.f32 0.0, %v1392
        %v1394 = vpop.f32.mrf.mxu0
        %1395 = vdwg.mxu0
        %v1396 = vsel %vm1310, %v1393, -1e+30
        %v1397 = vsel %vm1317, %v1396, -inf
        %1398 = vmax.xlane.f32.xlu0 %v1397
        %v1399 = vpop.xlane.xlu0 %1398
        %v1400 = vsub.f32 %v1396, %v1399
        %v1401 = vmul.f32 %v1400, 1.442695
        %v1402 = vpow.pop %v1401
        %v1403 = vsel %vm1317, %v1402, 0.0
        %1404 = vadd.xlane.f32.xlu0 %v1403
        %v1405 = vpop.xlane.xlu0 %1404
        %v1406 = vrcp.pop %v1405
        %v1407 = vmul.f32 %v1402, %v1406
        %v1408 = vpack.c.bf16 %v1407, %v1407
        %1409 = vrot.lane.b32.xlu0 %v1313, 56
        %v1410 = vpop.permute.xlu0 %1409
        %v1412 = vsel %vm1317, %v1408, 0
        %v1415 = vsel %vm1355, %v1410, 0
        %1417 = vmatpush.bf16.msra.mxu0 0
        %1418 = vmatpush.bf16.msra.mxu0 0
        %1419 = vmatpush.bf16.msra.mxu0 0
        %1420 = vmatpush.bf16.msra.mxu0 0
        %1421 = vmatpush.bf16.msra.mxu0 0
        %1422 = vmatpush.bf16.msra.mxu0 0
        %1423 = vmatpush.bf16.msra.mxu0 0
        %1424 = vmatpush.bf16.msra.mxu0 %v1415
        %1425 = vmatmul.bf16.gmra.mxu0 %v1412
        %v1426 = vpop.f32.mrf.mxu0
        %v1427 = vadd.f32 0.0, %v1426
        %v1428 = vpop.f32.mrf.mxu0
        %1429 = vdwg.mxu0
        %1430 = vrot.lane.b32.xlu0 %v1312, 112
        %v1431 = vpop.permute.xlu0 %1430
        %1432 = vrot.lane.b32.xlu0 %v1313, 80
        %v1433 = vpop.permute.xlu0 %1432
        %v1435 = vsel %vm1317, %v1431, 0
        %v1438 = vsel %vm1317, %v1433, 0
        %1440 = vmatpush.bf16.xpose.msra.mxu0 0
        %1441 = vmatpush.bf16.xpose.msra.mxu0 0
        %1442 = vmatpush.bf16.xpose.msra.mxu0 0
        %1443 = vmatpush.bf16.xpose.msra.mxu0 0
        %1444 = vmatpush.bf16.xpose.msra.mxu0 0
        %1445 = vmatpush.bf16.xpose.msra.mxu0 0
        %1446 = vmatpush.bf16.xpose.msra.mxu0 0
        %1447 = vmatpush.bf16.xpose.msra.mxu0 %v1438
        %1448 = vmatmul.bf16.gmra.mxu0 %v1435
        %v1449 = vpop.f32.mrf.mxu0
        %v1450 = vadd.f32 0.0, %v1449
        %v1451 = vpop.f32.mrf.mxu0
        %1452 = vdwg.mxu0
        %v1453 = vsel %vm1310, %v1450, -1e+30
        %v1454 = vsel %vm1317, %v1453, -inf
        %1455 = vmax.xlane.f32.xlu0 %v1454
        %v1456 = vpop.xlane.xlu0 %1455
        %v1457 = vsub.f32 %v1453, %v1456
        %v1458 = vmul.f32 %v1457, 1.442695
        %v1459 = vpow.pop %v1458
        %v1460 = vsel %vm1317, %v1459, 0.0
        %1461 = vadd.xlane.f32.xlu0 %v1460
        %v1462 = vpop.xlane.xlu0 %1461
        %v1463 = vrcp.pop %v1462
        %v1464 = vmul.f32 %v1459, %v1463
        %v1465 = vpack.c.bf16 %v1464, %v1464
        %1466 = vrot.lane.b32.xlu0 %v1313, 48
        %v1467 = vpop.permute.xlu0 %1466
        %v1469 = vsel %vm1317, %v1465, 0
        %v1472 = vsel %vm1355, %v1467, 0
        %1474 = vmatpush.bf16.msra.mxu0 0
        %1475 = vmatpush.bf16.msra.mxu0 0
        %1476 = vmatpush.bf16.msra.mxu0 0
        %1477 = vmatpush.bf16.msra.mxu0 0
        %1478 = vmatpush.bf16.msra.mxu0 0
        %1479 = vmatpush.bf16.msra.mxu0 0
        %1480 = vmatpush.bf16.msra.mxu0 0
        %1481 = vmatpush.bf16.msra.mxu0 %v1472
        %1482 = vmatmul.bf16.gmra.mxu0 %v1469
        %v1483 = vpop.f32.mrf.mxu0
        %v1484 = vadd.f32 0.0, %v1483
        %v1485 = vpop.f32.mrf.mxu0
        %1486 = vdwg.mxu0
        %1487 = vrot.lane.b32.xlu0 %v1312, 104
        %v1488 = vpop.permute.xlu0 %1487
        %1489 = vrot.lane.b32.xlu0 %v1313, 72
        %v1490 = vpop.permute.xlu0 %1489
        %v1492 = vsel %vm1317, %v1488, 0
        %v1495 = vsel %vm1317, %v1490, 0
        %1497 = vmatpush.bf16.xpose.msra.mxu0 0
        %1498 = vmatpush.bf16.xpose.msra.mxu0 0
        %1499 = vmatpush.bf16.xpose.msra.mxu0 0
        %1500 = vmatpush.bf16.xpose.msra.mxu0 0
        %1501 = vmatpush.bf16.xpose.msra.mxu0 0
        %1502 = vmatpush.bf16.xpose.msra.mxu0 0
        %1503 = vmatpush.bf16.xpose.msra.mxu0 0
        %1504 = vmatpush.bf16.xpose.msra.mxu0 %v1495
        %1505 = vmatmul.bf16.gmra.mxu0 %v1492
        %v1506 = vpop.f32.mrf.mxu0
        %v1507 = vadd.f32 0.0, %v1506
        %v1508 = vpop.f32.mrf.mxu0
        %1509 = vdwg.mxu0
        %v1510 = vsel %vm1310, %v1507, -1e+30
        %v1511 = vsel %vm1317, %v1510, -inf
        %1512 = vmax.xlane.f32.xlu0 %v1511
        %v1513 = vpop.xlane.xlu0 %1512
        %v1514 = vsub.f32 %v1510, %v1513
        %v1515 = vmul.f32 %v1514, 1.442695
        %v1516 = vpow.pop %v1515
        %v1517 = vsel %vm1317, %v1516, 0.0
        %1518 = vadd.xlane.f32.xlu0 %v1517
        %v1519 = vpop.xlane.xlu0 %1518
        %v1520 = vrcp.pop %v1519
        %v1521 = vmul.f32 %v1516, %v1520
        %v1522 = vpack.c.bf16 %v1521, %v1521
        %1523 = vrot.lane.b32.xlu0 %v1313, 40
        %v1524 = vpop.permute.xlu0 %1523
        %v1526 = vsel %vm1317, %v1522, 0
        %v1529 = vsel %vm1355, %v1524, 0
        %1531 = vmatpush.bf16.msra.mxu0 0
        %1532 = vmatpush.bf16.msra.mxu0 0
        %1533 = vmatpush.bf16.msra.mxu0 0
        %1534 = vmatpush.bf16.msra.mxu0 0
        %1535 = vmatpush.bf16.msra.mxu0 0
        %1536 = vmatpush.bf16.msra.mxu0 0
        %1537 = vmatpush.bf16.msra.mxu0 0
        %1538 = vmatpush.bf16.msra.mxu0 %v1529
        %1539 = vmatmul.bf16.gmra.mxu0 %v1526
        %v1540 = vpop.f32.mrf.mxu0
        %v1541 = vadd.f32 0.0, %v1540
        %v1542 = vpop.f32.mrf.mxu0
        %1543 = vdwg.mxu0
        %1545 = vrot.lane.b32.xlu0 %v1427, 8
        %v1546 = vpop.permute.xlu0 %1545
        %1549 = vrot.lane.b32.xlu0 %v1484, 16
        %v1550 = vpop.permute.xlu0 %1549
        %1553 = vrot.lane.b32.xlu0 %v1541, 24
        %v1554 = vpop.permute.xlu0 %1553
        %v1556 = vsel %vm1317, %v1369, %v1546
        %vm1557 = vcmask 130048
        %v1558 = vsel %vm1557, %v1556, %v1550
        %vm1559 = vcmask 195584
        %v1560 = vsel %vm1559, %v1558, %v1554
        %v1561 = vpack.c.bf16 %v1560, %v1560
        %v1562 = vld [vmem:[%s1204] sm:$0xf]
        %v1563 = vld [vmem:[%s1204 + $0x4] sm:$0xf]
        %v1564 = vld [vmem:[%s1204 + $0x8] sm:$0xf]
        %v1565 = vld [vmem:[%s1204 + $0xc] sm:$0xf]
        %v1566 = vld [vmem:[%s1007] sm:$0x1]
        %v1568 = vperm.slane %v1566, 0
        %v1574 = vunpack.c.l.b16 %v1562
        %v1575 = vunpack.c.l.b16 %v1563
        %v1576 = vunpack.c.l.b16 %v1564
        %v1577 = vunpack.c.l.b16 %v1565
        %v1578 = vpack.c.b16 %v1575, %v1574
        %v1579 = vpack.c.b16 %v1577, %v1576
        %v1583 = vsel %vm1289, %v1561, 0
        %1585 = vmatpush.bf16.msra.mxu0 0
        %1586 = vmatpush.bf16.msra.mxu0 0
        %1587 = vmatpush.bf16.msra.mxu0 0
        %1588 = vmatpush.bf16.msra.mxu0 0
        %1589 = vmatpush.bf16.msra.mxu0 0
        %1590 = vmatpush.bf16.msra.mxu0 0
        %1591 = vmatpush.bf16.msra.mxu0 %v1579
        %1592 = vmatpush.bf16.msra.mxu0 %v1578
        %1593 = vmatmul.bf16.gmra.mxu0 %v1583
        %v1594 = vpop.f32.mrf.mxu0
        %v1595 = vadd.f32 %v1568, %v1594
        %v1596 = vpop.f32.mrf.mxu0
        %1597 = vdwg.mxu0
        %v1598 = vadd.f32 %v1267, %v1595
        %v1599 = vld [vmem:[%s1016] sm:$0x1]
        %v1600 = vld [vmem:[%s1025] sm:$0x1]
        %v1601 = vsel %vm1289, %v1598, 0.0
        %1602 = vadd.xlane.f32.xlu0 %v1601
        %v1603 = vpop.xlane.xlu0 %1602
        %v1604 = vrcp.pop 32.0
        %v1605 = vmul.f32 32.0, %v1604
        %v1606 = vsub.f32 1.0, %v1605
        %v1607 = vmul.f32 %v1604, %v1606
        %v1608 = vadd.f32 %v1604, %v1607
        %vm1609 = vweird.f32 %v1604
        %v1610 = vsel %vm1609, %v1604, %v1608
        %v1611 = vmul.f32 %v1603, %v1610
        %v1612 = vsub.f32 %v1598, %v1611
        %v1613 = vmul.f32 %v1612, %v1612
        %v1614 = vsel %vm1289, %v1613, 0.0
        %1615 = vadd.xlane.f32.xlu0 %v1614
        %v1616 = vpop.xlane.xlu0 %1615
        %v1617 = vmul.f32 %v1616, %v1610
        %v1618 = vadd.f32 %v1617, 1e-05
        %v1619 = vrsqrt.pop %v1618
        %v1620 = vmul.f32 %v1619, %v1618
        %v1621 = vmul.f32 %v1620, %v1619
        %v1622 = vmul.f32 0.5, %v1621
        %v1623 = vsub.f32 1.5, %v1622
        %v1624 = vmul.f32 %v1619, %v1623
        %vm1625 = vweird.f32 %v1618
        %vm1626 = vweird.f32 %v1619
        %vm1627 = vmor %vm1625, %vm1626
        %v1628 = vsel %vm1627, %v1619, %v1624
        %v1629 = vmul.f32 %v1612, %v1628
        %v1631 = vperm.slane %v1599, 0
        %v1633 = vmul.f32 %v1629, %v1631
        %v1635 = vperm.slane %v1600, 0
        %v1637 = vadd.f32 %v1633, %v1635
        %v1638 = vpack.c.bf16 %v1637, %v1637
        %v1639 = vld [vmem:[%s1209] sm:$0xf]
        %v1640 = vld [vmem:[%s1209 + $0x4] sm:$0xf]
        %v1641 = vld [vmem:[%s1209 + $0x8] sm:$0xf]
        %v1642 = vld [vmem:[%s1209 + $0xc] sm:$0xf]
        %v1643 = vld [vmem:[%s1034] sm:$0x1]
        %v1645 = vperm.slane %v1643, 0
        %v1651 = vunpack.c.l.b16 %v1639
        %v1652 = vunpack.c.l.b16 %v1640
        %v1653 = vunpack.c.l.b16 %v1641
        %v1654 = vunpack.c.l.b16 %v1642
        %v1655 = vpack.c.b16 %v1652, %v1651
        %v1656 = vpack.c.b16 %v1654, %v1653
        %v1660 = vsel %vm1289, %v1638, 0
        %1662 = vmatpush.bf16.msra.mxu0 0
        %1663 = vmatpush.bf16.msra.mxu0 0
        %1664 = vmatpush.bf16.msra.mxu0 0
        %1665 = vmatpush.bf16.msra.mxu0 0
        %1666 = vmatpush.bf16.msra.mxu0 0
        %1667 = vmatpush.bf16.msra.mxu0 0
        %1668 = vmatpush.bf16.msra.mxu0 %v1656
        %1669 = vmatpush.bf16.msra.mxu0 %v1655
        %1670 = vmatmul.bf16.gmra.mxu0 %v1660
        %v1671 = vpop.f32.mrf.mxu0
        %v1672 = vadd.f32 %v1645, %v1671
        %v1673 = vpop.f32.mrf.mxu0
        %1674 = vdwg.mxu0
        %v1675 = vmax.f32 %v1672, 0.0
        %v1676 = vpack.c.bf16 %v1675, %v1675
        %v1677 = vld [vmem:[%s1214] sm:$0xf]
        %v1678 = vld [vmem:[%s1214 + $0x4] sm:$0xf]
        %v1679 = vld [vmem:[%s1214 + $0x8] sm:$0xf]
        %v1680 = vld [vmem:[%s1214 + $0xc] sm:$0xf]
        %v1681 = vld [vmem:[%s1214 + $0x10] sm:$0xf]
        %v1682 = vld [vmem:[%s1214 + $0x14] sm:$0xf]
        %v1683 = vld [vmem:[%s1214 + $0x18] sm:$0xf]
        %v1684 = vld [vmem:[%s1214 + $0x1c] sm:$0xf]
        %v1685 = vld [vmem:[%s1214 + $0x20] sm:$0xf]
        %v1686 = vld [vmem:[%s1214 + $0x24] sm:$0xf]
        %v1687 = vld [vmem:[%s1214 + $0x28] sm:$0xf]
        %v1688 = vld [vmem:[%s1214 + $0x2c] sm:$0xf]
        %v1689 = vld [vmem:[%s1214 + $0x30] sm:$0xf]
        %v1690 = vld [vmem:[%s1214 + $0x34] sm:$0xf]
        %v1691 = vld [vmem:[%s1214 + $0x38] sm:$0xf]
        %v1692 = vld [vmem:[%s1214 + $0x3c] sm:$0xf]
        %v1693 = vld [vmem:[%s1043] sm:$0x1]
        %v1695 = vperm.slane %v1693, 0
        %v1713 = vunpack.c.l.b16 %v1677
        %v1714 = vunpack.c.l.b16 %v1678
        %v1715 = vunpack.c.l.b16 %v1679
        %v1716 = vunpack.c.l.b16 %v1680
        %v1717 = vunpack.c.l.b16 %v1681
        %v1718 = vunpack.c.l.b16 %v1682
        %v1719 = vunpack.c.l.b16 %v1683
        %v1720 = vunpack.c.l.b16 %v1684
        %v1721 = vunpack.c.l.b16 %v1685
        %v1722 = vunpack.c.l.b16 %v1686
        %v1723 = vunpack.c.l.b16 %v1687
        %v1724 = vunpack.c.l.b16 %v1688
        %v1725 = vunpack.c.l.b16 %v1689
        %v1726 = vunpack.c.l.b16 %v1690
        %v1727 = vunpack.c.l.b16 %v1691
        %v1728 = vunpack.c.l.b16 %v1692
        %v1729 = vpack.c.b16 %v1714, %v1713
        %v1730 = vpack.c.b16 %v1716, %v1715
        %v1731 = vpack.c.b16 %v1718, %v1717
        %v1732 = vpack.c.b16 %v1720, %v1719
        %v1733 = vpack.c.b16 %v1722, %v1721
        %v1734 = vpack.c.b16 %v1724, %v1723
        %v1735 = vpack.c.b16 %v1726, %v1725
        %v1736 = vpack.c.b16 %v1728, %v1727
        %1745 = vmatpush.bf16.msra.mxu0 %v1736
        %1746 = vmatpush.bf16.msra.mxu0 %v1735
        %1747 = vmatpush.bf16.msra.mxu0 %v1734
        %1748 = vmatpush.bf16.msra.mxu0 %v1733
        %1749 = vmatpush.bf16.msra.mxu0 %v1732
        %1750 = vmatpush.bf16.msra.mxu0 %v1731
        %1751 = vmatpush.bf16.msra.mxu0 %v1730
        %1752 = vmatpush.bf16.msra.mxu0 %v1729
        %1753 = vmatmul.bf16.gmra.mxu0 %v1676
        %v1754 = vpop.f32.mrf.mxu0
        %v1755 = vadd.f32 %v1695, %v1754
        %v1756 = vpop.f32.mrf.mxu0
        %1757 = vdwg.mxu0
        %v1758 = vadd.f32 %v1637, %v1755
        %v1759 = vld [vmem:[%s1052] sm:$0x1]
        %v1760 = vld [vmem:[%s1061] sm:$0x1]
        %v1761 = vsel %vm1289, %v1758, 0.0
        %1762 = vadd.xlane.f32.xlu0 %v1761
        %v1763 = vpop.xlane.xlu0 %1762
        %v1764 = vmul.f32 %v1763, %v1610
        %v1765 = vsub.f32 %v1758, %v1764
        %v1766 = vmul.f32 %v1765, %v1765
        %v1767 = vsel %vm1289, %v1766, 0.0
        %1768 = vadd.xlane.f32.xlu0 %v1767
        %v1769 = vpop.xlane.xlu0 %1768
        %v1770 = vmul.f32 %v1769, %v1610
        %v1771 = vadd.f32 %v1770, 1e-05
        %v1772 = vrsqrt.pop %v1771
        %v1773 = vmul.f32 %v1772, %v1771
        %v1774 = vmul.f32 %v1773, %v1772
        %v1775 = vmul.f32 0.5, %v1774
        %v1776 = vsub.f32 1.5, %v1775
        %v1777 = vmul.f32 %v1772, %v1776
        %vm1778 = vweird.f32 %v1771
        %vm1779 = vweird.f32 %v1772
        %vm1780 = vmor %vm1778, %vm1779
        %v1781 = vsel %vm1780, %v1772, %v1777
        %v1782 = vmul.f32 %v1765, %v1781
        %v1784 = vperm.slane %v1759, 0
        %v1786 = vmul.f32 %v1782, %v1784
        %v1788 = vperm.slane %v1760, 0
        %v1790 = vadd.f32 %v1786, %v1788
        %1791 = vst.msk [vmem:[%s1266] sm:$0xff] %vm1289, %v1790
        %p1792 = scmp.eq.s32.totalorder %s49, 1
        // Predicated region
        $region185: #{tpu_custom_call.1} parent=119 // pred_check
          %p1793 = pneg %p1792
        $region186: #{tpu_custom_call.1} parent=119 // pred_check_branch
          %1795 = sbr.rel (%p1793) target = $region188
        $region187: #{tpu_custom_call.1} parent=119 // pred_region
          %v1796 = vld [vmem:[#allocation19] sm:$0x1]
          %v1797 = vld [vmem:[#allocation20] sm:$0x1]
          %v1798 = vsel %vm1289, %v1790, 0.0
          %1799 = vadd.xlane.f32.xlu0 %v1798
          %v1800 = vpop.xlane.xlu0 %1799
          %v1801 = vmul.f32 %v1800, %v1610
          %v1802 = vsub.f32 %v1790, %v1801
          %v1803 = vmul.f32 %v1802, %v1802
          %v1804 = vsel %vm1289, %v1803, 0.0
          %1805 = vadd.xlane.f32.xlu0 %v1804
          %v1806 = vpop.xlane.xlu0 %1805
          %v1807 = vmul.f32 %v1806, %v1610
          %v1808 = vadd.f32 %v1807, 1e-05
          %v1809 = vrsqrt.pop %v1808
          %v1810 = vmul.f32 %v1809, %v1808
          %v1811 = vmul.f32 %v1810, %v1809
          %v1812 = vmul.f32 0.5, %v1811
          %v1813 = vsub.f32 1.5, %v1812
          %v1814 = vmul.f32 %v1809, %v1813
          %vm1815 = vweird.f32 %v1808
          %vm1816 = vweird.f32 %v1809
          %vm1817 = vmor %vm1815, %vm1816
          %v1818 = vsel %vm1817, %v1809, %v1814
          %v1819 = vmul.f32 %v1802, %v1818
          %v1821 = vperm.slane %v1796, 0
          %v1823 = vmul.f32 %v1819, %v1821
          %v1825 = vperm.slane %v1797, 0
          %v1827 = vadd.f32 %v1823, %v1825
          %v1828 = vpack.c.bf16 %v1827, %v1827
          %v1829 = vld [vmem:[%s19] sm:$0xf]
          %v1830 = vld [vmem:[%s19 + $0x4] sm:$0xf]
          %v1831 = vld [vmem:[%s19 + $0x8] sm:$0xf]
          %v1832 = vld [vmem:[%s19 + $0xc] sm:$0xf]
          %v1833 = vld [vmem:[%s20] sm:$0x1]
          %v1835 = vperm.slane %v1833, 0
          %v1841 = vunpack.c.l.b16 %v1829
          %v1842 = vunpack.c.l.b16 %v1830
          %v1843 = vunpack.c.l.b16 %v1831
          %v1844 = vunpack.c.l.b16 %v1832
          %v1845 = vpack.c.b16 %v1842, %v1841
          %v1846 = vpack.c.b16 %v1844, %v1843
          %v1850 = vsel %vm1289, %v1828, 0
          %1852 = vmatpush.bf16.msra.mxu0 0
          %1853 = vmatpush.bf16.msra.mxu0 0
          %1854 = vmatpush.bf16.msra.mxu0 0
          %1855 = vmatpush.bf16.msra.mxu0 0
          %1856 = vmatpush.bf16.msra.mxu0 0
          %1857 = vmatpush.bf16.msra.mxu0 0
          %1858 = vmatpush.bf16.msra.mxu0 %v1846
          %1859 = vmatpush.bf16.msra.mxu0 %v1845
          %1860 = vmatmul.bf16.gmra.mxu0 %v1850
          %v1861 = vpop.f32.mrf.mxu0
          %v1862 = vadd.f32 %v1835, %v1861
          %v1863 = vpop.f32.mrf.mxu0
          %1864 = vdwg.mxu0
          %v1865 = vld [vmem:[#allocation21] sm:$0xf]
          %v1866 = vld [vmem:[#allocation21 + $0x4] sm:$0xf]
          %v1867 = vld [vmem:[#allocation21 + $0x8] sm:$0xf]
          %v1868 = vld [vmem:[#allocation21 + $0xc] sm:$0xf]
          %v1869 = vld [vmem:[%s22] sm:$0x1]
          %v1871 = vperm.slane %v1869, 0
          %v1877 = vunpack.c.l.b16 %v1865
          %v1878 = vunpack.c.l.b16 %v1866
          %v1879 = vunpack.c.l.b16 %v1867
          %v1880 = vunpack.c.l.b16 %v1868
          %v1881 = vpack.c.b16 %v1878, %v1877
          %v1882 = vpack.c.b16 %v1880, %v1879
          %1885 = vmatpush.bf16.msra.mxu0 0
          %1886 = vmatpush.bf16.msra.mxu0 0
          %1887 = vmatpush.bf16.msra.mxu0 0
          %1888 = vmatpush.bf16.msra.mxu0 0
          %1889 = vmatpush.bf16.msra.mxu0 0
          %1890 = vmatpush.bf16.msra.mxu0 0
          %1891 = vmatpush.bf16.msra.mxu0 %v1882
          %1892 = vmatpush.bf16.msra.mxu0 %v1881
          %1893 = vmatmul.bf16.gmra.mxu0 %v1850
          %v1894 = vpop.f32.mrf.mxu0
          %v1895 = vadd.f32 %v1871, %v1894
          %v1896 = vpop.f32.mrf.mxu0
          %1897 = vdwg.mxu0
          %v1898 = vmax.f32 %v1895, 0.0
          %v1899 = vpack.c.bf16 %v1898, %v1898
          %v1900 = vld [vmem:[%s23] sm:$0xf]
          %v1901 = vld [vmem:[%s23 + $0x4] sm:$0xf]
          %v1902 = vld [vmem:[%s23 + $0x8] sm:$0xf]
          %v1903 = vld [vmem:[%s23 + $0xc] sm:$0xf]
          %v1904 = vld [vmem:[%s23 + $0x10] sm:$0xf]
          %v1905 = vld [vmem:[%s23 + $0x14] sm:$0xf]
          %v1906 = vld [vmem:[%s23 + $0x18] sm:$0xf]
          %v1907 = vld [vmem:[%s23 + $0x1c] sm:$0xf]
          %v1908 = vld [vmem:[%s23 + $0x20] sm:$0xf]
          %v1909 = vld [vmem:[%s23 + $0x24] sm:$0xf]
          %v1910 = vld [vmem:[%s23 + $0x28] sm:$0xf]
          %v1911 = vld [vmem:[%s23 + $0x2c] sm:$0xf]
          %v1912 = vld [vmem:[%s23 + $0x30] sm:$0xf]
          %v1913 = vld [vmem:[%s23 + $0x34] sm:$0xf]
          %v1914 = vld [vmem:[%s23 + $0x38] sm:$0xf]
          %v1915 = vld [vmem:[%s23 + $0x3c] sm:$0xf]
          %v1916 = vld [vmem:[%s24] sm:$0x1]
          %v1918 = vperm.slane %v1916, 0
          %v1936 = vunpack.c.l.b16 %v1900
          %v1937 = vunpack.c.l.b16 %v1901
          %v1938 = vunpack.c.l.b16 %v1902
          %v1939 = vunpack.c.l.b16 %v1903
          %v1940 = vunpack.c.l.b16 %v1904
          %v1941 = vunpack.c.l.b16 %v1905
          %v1942 = vunpack.c.l.b16 %v1906
          %v1943 = vunpack.c.l.b16 %v1907
          %v1944 = vunpack.c.l.b16 %v1908
          %v1945 = vunpack.c.l.b16 %v1909
          %v1946 = vunpack.c.l.b16 %v1910
          %v1947 = vunpack.c.l.b16 %v1911
          %v1948 = vunpack.c.l.b16 %v1912
          %v1949 = vunpack.c.l.b16 %v1913
          %v1950 = vunpack.c.l.b16 %v1914
          %v1951 = vunpack.c.l.b16 %v1915
          %v1952 = vpack.c.b16 %v1937, %v1936
          %v1953 = vpack.c.b16 %v1939, %v1938
          %v1954 = vpack.c.b16 %v1941, %v1940
          %v1955 = vpack.c.b16 %v1943, %v1942
          %v1956 = vpack.c.b16 %v1945, %v1944
          %v1957 = vpack.c.b16 %v1947, %v1946
          %v1958 = vpack.c.b16 %v1949, %v1948
          %v1959 = vpack.c.b16 %v1951, %v1950
          %1968 = vmatpush.bf16.msra.mxu0 %v1959
          %1969 = vmatpush.bf16.msra.mxu0 %v1958
          %1970 = vmatpush.bf16.msra.mxu0 %v1957
          %1971 = vmatpush.bf16.msra.mxu0 %v1956
          %1972 = vmatpush.bf16.msra.mxu0 %v1955
          %1973 = vmatpush.bf16.msra.mxu0 %v1954
          %1974 = vmatpush.bf16.msra.mxu0 %v1953
          %1975 = vmatpush.bf16.msra.mxu0 %v1952
          %1976 = vmatmul.bf16.gmra.mxu0 %v1899
          %v1977 = vpop.f32.mrf.mxu0
          %v1978 = vadd.f32 %v1918, %v1977
          %v1979 = vpop.f32.mrf.mxu0
          %1980 = vdwg.mxu0
          %v1981 = vtanh.pop %v1978
          %v1982 = vadd.f32 %v1862, %v1981
          %1983 = vst [vmem:[%s1194] sm:$0xff] %v1982
        $region188: #{tpu_custom_call.1} parent=119 // pred_fallthru
          _
        %s1984 = sand.u32 %s655, 1
        %s1985 = scalar_lea.sflag [#allocation5], %s1984
        %s1986 = sand.u32 %s655, 1
        %s1987 = smul.addr %s1986, 8
        %s1988 = scalar_lea.vmem [#allocation23], %s1987
        // Predicated region
        $region189: #{tpu_custom_call.1} parent=119 // pred_check
          %p1989 = pneg %p665
        $region190: #{tpu_custom_call.1} parent=119 // pred_check_branch
          %1991 = sbr.rel (%p1989) target = $region192
        $region191: #{tpu_custom_call.1} parent=119 // pred_region
          %1993 = vsyncadd %s1985, 0
          %s1994 = smul.addr %s50, 8
          %s1995 = scalar_lea.hbm %s25, %s1994
          %s1997 = sshll.u32 %s1988, 4
          %s1998 = int_to_ptr.vmem [resolvable:$true] %s1997
          %s1999 = sshll.u32 %s1995, 4
          %s2000 = int_to_ptr.hbm [resolvable:$true] %s1999
          %2002 = dma.vmem_to_hbm [thread:$0]  %s1998, 128, %s2000, %s1985
        $region192: #{tpu_custom_call.1} parent=119 // pred_fallthru
          _
      $region120: #{tpu_custom_call.1} parent=5 // pred_fallthru
        _
      %p2003 = scmp.le.s32.totalorder 2, %s40
      // Predicated region
      $region193: #{tpu_custom_call.1} parent=5 // pred_check
        %p2004 = pneg %p2003
      $region194: #{tpu_custom_call.1} parent=5 // pred_check_branch
        %2006 = sbr.rel (%p2004) target = $region196
      $region195: #{tpu_custom_call.1} parent=5 // pred_region
        %s2007 = ssub.s32 %s40, 2
        // Predicated region
        $region197: #{tpu_custom_call.1} parent=195 // pred_check
          %p2008 = pneg %p671
        $region198: #{tpu_custom_call.1} parent=195 // pred_check_branch
          %2010 = sbr.rel (%p2008) target = $region200
        $region199: #{tpu_custom_call.1} parent=195 // pred_region
          %s2011 = sand.u32 %s656, 1
          %s2012 = scalar_lea.sflag [#allocation5], %s2011
          %s2013 = sand.u32 %s656, 1
          %s2014 = smul.addr %s2013, 8
          %s2015 = scalar_lea.vmem [#allocation23], %s2014
          %2017 = dma.done %s2012, 128
        $region200: #{tpu_custom_call.1} parent=195 // pred_fallthru
          _
      $region196: #{tpu_custom_call.1} parent=5 // pred_fallthru
        _
    $region6: #{tpu_custom_call.1} parent=1 // loop_footer
      %s44 = sadd.s32 1, %s40
    $region7: #{tpu_custom_call.1} parent=1 // loop_footer_branch
      %39 = sbr.rel target = $region3
    $region8: #{tpu_custom_call.1} parent=1 // loop_exit
      _
    %2018 = vsyncpa [#allocation4], 1
    %s2019 = scalar_lea.sflag [#allocation4], 1
    %2020 = vsyncpa %s2019, 1
    %2021 = vsyncpa [#allocation7], 1
    %2022 = vsyncpa [#allocation10], 1
    %2023 = vsyncpa [#allocation22], 1
    %2024 = vsyncpa [#allocation5], 1
    %s2025 = scalar_lea.sflag [#allocation5], 1
    %2026 = vsyncpa %s2025, 1

</llo_original>
